<compile_context>
chip_gen: v7x
topology: tpu7x:2x2x1
jax: 0.10.0
libtpu: 0.0.40
codegen_flags: <defaults>
</compile_context>

<pallas_src>
import jax
import jax.numpy as jnp
from jax.experimental import pallas as pl
from jax.experimental.pallas import tpu as pltpu


def lstm_recurrence_kernel(x_ref, mask_ref, wih_ref, whh_ref, bias_ref,
                           h_out_ref, xw_ref):
    """Fused input projection + serial LSTM recurrence.

    x_ref:    (T*Bp, E)   f32  time-major embedded inputs (flattened)
    mask_ref: (T, Bp, 1)  f32  1.0 while t < len[b], else 0.0
    wih_ref:  (E, 4H)     f32  W_ih.T, g-gate columns pre-scaled by 2
    whh_ref:  (H, 4H)     f32  W_hh.T, g-gate columns pre-scaled by 2
    bias_ref: (1, 4H)     f32  b_ih + b_hh, g entries pre-scaled by 2
    h_out_ref:(Bp, H)     f32  hidden state at the last valid timestep
    xw_ref:   (T, Bp, 4H) f32  VMEM scratch for the hoisted input projection
    """
    T, Bp, G = xw_ref.shape
    H = whh_ref.shape[0]

    # --- Input projection for ALL timesteps: one big lane-dense MXU matmul ---
    xw = jnp.dot(x_ref[...], wih_ref[...], preferred_element_type=jnp.float32)
    xw_ref[...] = xw.reshape(T, Bp, G) + bias_ref[...]

    whh = whh_ref[...]                                       # resident (H, 4H)

    # Lane-constant fixup turning sigmoid(2x) into tanh(x) on the g-gate lanes
    # only: act = a * sigmoid(pre) + b, a = [1,1,2,1], b = [0,0,-1,0].
    lane = jax.lax.broadcasted_iota(jnp.int32, (1, G), 1)
    is_g = jnp.logical_and(lane >= 2 * H, lane < 3 * H)
    a_fix = jnp.where(is_g, 2.0, 1.0).astype(jnp.float32)
    b_fix = jnp.where(is_g, -1.0, 0.0).astype(jnp.float32)

    def step(t, carry):
        h, c = carry
        # One fused (Bp, H) @ (H, 4H) MXU matmul per step (4H = 128 lanes).
        pre = xw_ref[t] + jnp.dot(h, whh, preferred_element_type=jnp.float32)
        # Single full-vreg EUP sigmoid instead of 4 quarter-width ops.
        s = jax.nn.sigmoid(pre)
        act = s * a_fix + b_fix                              # one VPU FMA
        i_g = act[:, 0 * H:1 * H]
        f_g = act[:, 1 * H:2 * H]
        g_g = act[:, 2 * H:3 * H]
        o_g = act[:, 3 * H:4 * H]
        c_new = f_g * c + i_g * g_g
        h_new = o_g * jnp.tanh(c_new)
        # pack_padded_sequence semantics: freeze (h, c) once t >= len[b].
        keep = mask_ref[t] != 0.0                            # (Bp, 1) -> vsel
        h = jnp.where(keep, h_new, h)
        c = jnp.where(keep, c_new, c)
        return h, c

    h0 = jnp.zeros((Bp, H), jnp.float32)
    c0 = jnp.zeros((Bp, H), jnp.float32)
    # Partial unroll: full at small T, capped so large T doesn't explode
    # bundle count / compile time / vreg pressure.
    h_last, _ = jax.lax.fori_loop(0, T, step, (h0, c0), unroll=min(T, 8))
    h_out_ref[...] = h_last


def lstm_model_pallas(tokens, emb, W_ih, W_hh, b_ih, b_hh, W_d, b_d):
    """tokens: (B, T) int32 token ids (0 = pad, right-padded), emb: (V, E)."""
    B, T = tokens.shape
    E = emb.shape[1]
    H = W_hh.shape[1]
    G = 4 * H

    # Pad batch to the f32 sublane width so h/c/gate tensors fill vregs.
    SUB = 8
    Bp = ((B + SUB - 1) // SUB) * SUB
    tok_p = jnp.zeros((Bp, T), tokens.dtype).at[:B, :].set(tokens)

    # Sequence lengths; assumes right padding and pad id 0 never appears
    # inside a valid sequence (matches the pack_padded_sequence setup).
    lens = jnp.sum(tok_p != 0, axis=-1).astype(jnp.int32)            # (Bp,)

    # Time-major embedding gather (no later transpose of the xw slab),
    # flattened to (T*Bp, E) for the fused in-kernel projection matmul.
    x = emb[tok_p.T].reshape(T * Bp, E).astype(jnp.float32)

    # Fold the *2 of tanh(x) = 2*sigmoid(2x) - 1 into the g-gate columns
    # (exact power-of-two scaling, zero runtime cost).
    g_scale = jnp.ones((G,), jnp.float32).at[2 * H:3 * H].set(2.0)
    wih_t = W_ih.T * g_scale[None, :]                                # (E, 4H)
    whh_t = W_hh.T * g_scale[None, :]                                # (H, 4H)
    bias = ((b_ih + b_hh) * g_scale).reshape(1, G)                   # (1, 4H)

    # Validity mask (pack_padded_sequence), hoisted out of the time loop.
    mask = (jnp.arange(T)[:, None] < lens[None, :]).astype(jnp.float32)
    mask = mask[:, :, None]                                          # (T,Bp,1)

    h_last = pl.pallas_call(
        lstm_recurrence_kernel,
        out_shape=jax.ShapeDtypeStruct((Bp, H), jnp.float32),
        in_specs=[
            pl.BlockSpec(memory_space=pltpu.MemorySpace.VMEM),       # x
            pl.BlockSpec(memory_space=pltpu.MemorySpace.VMEM),       # mask
            pl.BlockSpec(memory_space=pltpu.MemorySpace.VMEM),       # W_ih.T
            pl.BlockSpec(memory_space=pltpu.MemorySpace.VMEM),       # W_hh.T
            pl.BlockSpec(memory_space=pltpu.MemorySpace.VMEM),       # bias
        ],
        out_specs=pl.BlockSpec(memory_space=pltpu.MemorySpace.VMEM),
        scratch_shapes=[pltpu.VMEM((T, Bp, G), jnp.float32)],        # xw slab
    )(x, mask, wih_t, whh_t, bias)

    # 3-wide dense head in XLA on the lane-denser (B, H) hidden state
    # (a 3-lane store inside the kernel would be a masked partial store).
    return h_last[:B] @ W_d.T + b_d


def lstm_model_ref(tokens, emb, W_ih, W_hh, b_ih, b_hh, W_d, b_d):
    """Pure-JAX reference matching the PyTorch module semantics."""
    x = emb[tokens]
    B, T, E = x.shape
    H = W_hh.shape[1]
    lens = jnp.sum(tokens != 0, axis=-1)
    h = jnp.zeros((B, H), jnp.float32)
    c = jnp.zeros((B, H), jnp.float32)
    for t in range(T):
        xt = x[:, t, :]
        gates = xt @ W_ih.T + b_ih + h @ W_hh.T + b_hh
        i = jax.nn.sigmoid(gates[:, :H])
        f = jax.nn.sigmoid(gates[:, H:2 * H])
        g = jnp.tanh(gates[:, 2 * H:3 * H])
        o = jax.nn.sigmoid(gates[:, 3 * H:])
        c_new = f * c + i * g
        h_new = o * jnp.tanh(c_new)
        mask = (lens > t)[:, None]
        h = jnp.where(mask, h_new, h)
        c = jnp.where(mask, c_new, c)
    return h @ W_d.T + b_d


if __name__ == "__main__":
    B, T = 4, 8          # batch, max seq len
    V, E = 20, 32        # vocab size, embed_dim
    H, P = 32, 3         # hidden_dim, polarities_dim

    key = jax.random.PRNGKey(0)
    k_emb, k_tok, k_wih, k_whh, k_bih, k_bhh, k_wd, k_bd = jax.random.split(key, 8)

    # Deterministic "pretrained" embedding + LSTM/Linear params.
    emb = jax.random.normal(k_emb, (V, E), jnp.float32) * 0.1
    W_ih = jax.random.normal(k_wih, (4 * H, E), jnp.float32) * 0.1
    W_hh = jax.random.normal(k_whh, (4 * H, H), jnp.float32) * 0.1
    b_ih = jax.random.normal(k_bih, (4 * H,), jnp.float32) * 0.1
    b_hh = jax.random.normal(k_bhh, (4 * H,), jnp.float32) * 0.1
    W_d = jax.random.normal(k_wd, (P, H), jnp.float32) * 0.1
    b_d = jax.random.normal(k_bd, (P,), jnp.float32) * 0.1

    # Right-padded token ids (0 = pad), every row has at least one valid token.
    lens = jnp.array([8, 5, 3, 6], dtype=jnp.int32)
    tokens = jax.random.randint(k_tok, (B, T), 1, V, dtype=jnp.int32)
    tokens = jnp.where(jnp.arange(T)[None, :] < lens[:, None], tokens, 0)

    out = lstm_model_pallas(tokens, emb, W_ih, W_hh, b_ih, b_hh, W_d, b_d)
    out = jax.block_until_ready(out)

    ref = lstm_model_ref(tokens, emb, W_ih, W_hh, b_ih, b_hh, W_d, b_d)
    assert out.shape == (B, P)
    assert jnp.allclose(out, ref, rtol=1e-5, atol=1e-5), (out, ref)

    print("KERNEL_OK")
</pallas_src>

<mosaic_0001>
module attributes {stable_mosaic.version = 11 : i64} {
  func.func @lstm_recurrence_kernel(%arg0: memref<64x32xf32, #tpu.memory_space<vmem>>, %arg1: memref<8x8x1xf32, #tpu.memory_space<vmem>>, %arg2: memref<32x128xf32, #tpu.memory_space<vmem>>, %arg3: memref<32x128xf32, #tpu.memory_space<vmem>>, %arg4: memref<1x128xf32, #tpu.memory_space<vmem>>, %arg5: memref<8x32xf32, #tpu.memory_space<vmem>>, %arg6: memref<8x8x128xf32, #tpu.memory_space<vmem>>) attributes {dimension_semantics = [], scalar_prefetch = 0 : i64, scratch_operands = 1 : i64, tpu.core_type = #tpu.core_type<tc>} {
    %c0 = arith.constant 0 : index
    %c0_0 = arith.constant 0 : index
    %0 = vector.load %arg0[%c0, %c0_0] : memref<64x32xf32, #tpu.memory_space<vmem>>, vector<64x32xf32>
    %c0_1 = arith.constant 0 : index
    %c0_2 = arith.constant 0 : index
    %1 = vector.load %arg2[%c0_1, %c0_2] : memref<32x128xf32, #tpu.memory_space<vmem>>, vector<32x128xf32>
    %cst = arith.constant dense<0.000000e+00> : vector<64x128xf32>
    %2 = tpu.matmul %0, %1, %cst {dimension_numbers = #tpu.dot_dimension_numbers<[1], [0], [0], [1], [0, 0, 1, 1], [], []>} : vector<64x32xf32>, vector<32x128xf32>, vector<64x128xf32> -> vector<64x128xf32>
    %3 = vector.shape_cast %2 : vector<64x128xf32> to vector<8x8x128xf32>
    %c0_3 = arith.constant 0 : index
    %c0_4 = arith.constant 0 : index
    %4 = vector.load %arg4[%c0_3, %c0_4] : memref<1x128xf32, #tpu.memory_space<vmem>>, vector<1x128xf32>
    %5 = vector.shape_cast %4 : vector<1x128xf32> to vector<1x1x128xf32>
    %6 = vector.broadcast %5 : vector<1x1x128xf32> to vector<8x8x128xf32>
    %7 = arith.addf %3, %6 : vector<8x8x128xf32>
    %c0_5 = arith.constant 0 : index
    %c0_6 = arith.constant 0 : index
    %c0_7 = arith.constant 0 : index
    %8 = vector.load %arg6[%c0_5, %c0_6, %c0_7] : memref<8x8x128xf32, #tpu.memory_space<vmem>>, vector<8x8x128xf32>
    tpu.vector_store %arg6[%c0_5, %c0_6, %c0_7], %7 {strides = array<i32>} : memref<8x8x128xf32, #tpu.memory_space<vmem>>, vector<8x8x128xf32>,
    %c0_8 = arith.constant 0 : index
    %c0_9 = arith.constant 0 : index
    %9 = vector.load %arg3[%c0_8, %c0_9] : memref<32x128xf32, #tpu.memory_space<vmem>>, vector<32x128xf32>
    %10 = tpu.iota {dimensions = array<i32: 1>} : vector<1x128xi32>
    %c64_i32 = arith.constant 64 : i32
    %11 = vector.broadcast %c64_i32 : i32 to vector<1x128xi32>
    %12 = arith.cmpi sge, %10, %11 : vector<1x128xi32>
    %c96_i32 = arith.constant 96 : i32
    %13 = vector.broadcast %c96_i32 : i32 to vector<1x128xi32>
    %14 = arith.cmpi slt, %10, %13 : vector<1x128xi32>
    %15 = arith.andi %12, %14 : vector<1x128xi1>
    %cst_10 = arith.constant 2.000000e+00 : f32
    %cst_11 = arith.constant 1.000000e+00 : f32
    %16 = vector.broadcast %cst_10 : f32 to vector<1x128xf32>
    %17 = vector.broadcast %cst_11 : f32 to vector<1x128xf32>
    %18 = arith.select %15, %16, %17 : vector<1x128xi1>, vector<1x128xf32>
    %cst_12 = arith.constant -1.000000e+00 : f32
    %cst_13 = arith.constant 0.000000e+00 : f32
    %19 = vector.broadcast %cst_12 : f32 to vector<1x128xf32>
    %20 = vector.broadcast %cst_13 : f32 to vector<1x128xf32>
    %21 = arith.select %15, %19, %20 : vector<1x128xi1>, vector<1x128xf32>
    %cst_14 = arith.constant 0.000000e+00 : f32
    %22 = vector.broadcast %cst_14 : f32 to vector<8x32xf32>
    %cst_15 = arith.constant 0.000000e+00 : f32
    %23 = vector.broadcast %cst_15 : f32 to vector<8x32xf32>
    %c0_i32 = arith.constant 0 : i32
    %24 = arith.index_cast %c0_i32 : i32 to index
    %c0_16 = arith.constant 0 : index
    %c0_17 = arith.constant 0 : index
    %25 = vector.load %arg6[%24, %c0_16, %c0_17] : memref<8x8x128xf32, #tpu.memory_space<vmem>>, vector<1x8x128xf32>
    %26 = vector.shape_cast %25 : vector<1x8x128xf32> to vector<8x128xf32>
    %cst_18 = arith.constant dense<0.000000e+00> : vector<8x128xf32>
    %27 = tpu.matmul %22, %9, %cst_18 {dimension_numbers = #tpu.dot_dimension_numbers<[1], [0], [0], [1], [0, 0, 1, 1], [], []>} : vector<8x32xf32>, vector<32x128xf32>, vector<8x128xf32> -> vector<8x128xf32>
    %28 = arith.addf %26, %27 : vector<8x128xf32>
    %29 = arith.negf %28 : vector<8x128xf32>
    %30 = math.exp %29 : vector<8x128xf32>
    %cst_19 = arith.constant 1.000000e+00 : f32
    %31 = vector.broadcast %cst_19 : f32 to vector<8x128xf32>
    %32 = arith.addf %31, %30 : vector<8x128xf32>
    %33 = arith.divf %31, %32 : vector<8x128xf32>
    %34 = vector.broadcast %18 : vector<1x128xf32> to vector<8x128xf32>
    %35 = arith.mulf %33, %34 : vector<8x128xf32>
    %36 = vector.broadcast %21 : vector<1x128xf32> to vector<8x128xf32>
    %37 = arith.addf %35, %36 : vector<8x128xf32>
    %38 = vector.extract_strided_slice %37 {offsets = [0, 0], sizes = [8, 32], strides = [1, 1]} : vector<8x128xf32> to vector<8x32xf32>
    %39 = vector.extract_strided_slice %37 {offsets = [0, 32], sizes = [8, 32], strides = [1, 1]} : vector<8x128xf32> to vector<8x32xf32>
    %40 = vector.extract_strided_slice %37 {offsets = [0, 64], sizes = [8, 32], strides = [1, 1]} : vector<8x128xf32> to vector<8x32xf32>
    %41 = vector.extract_strided_slice %37 {offsets = [0, 96], sizes = [8, 32], strides = [1, 1]} : vector<8x128xf32> to vector<8x32xf32>
    %42 = arith.mulf %39, %23 : vector<8x32xf32>
    %43 = arith.mulf %38, %40 : vector<8x32xf32>
    %44 = arith.addf %42, %43 : vector<8x32xf32>
    %45 = math.tanh %44 : vector<8x32xf32>
    %46 = arith.mulf %41, %45 : vector<8x32xf32>
    %47 = arith.index_cast %c0_i32 : i32 to index
    %c0_20 = arith.constant 0 : index
    %c0_21 = arith.constant 0 : index
    %48 = vector.load %arg1[%47, %c0_20, %c0_21] : memref<8x8x1xf32, #tpu.memory_space<vmem>>, vector<1x8x1xf32>
    %49 = vector.shape_cast %48 : vector<1x8x1xf32> to vector<8x1xf32>
    %cst_22 = arith.constant 0.000000e+00 : f32
    %50 = vector.broadcast %cst_22 : f32 to vector<8x1xf32>
    %51 = arith.cmpf one, %49, %50 : vector<8x1xf32>
    %52 = vector.shape_cast %51 : vector<8x1xi1> to vector<8x1xi1>
    %53 = vector.broadcast %52 : vector<8x1xi1> to vector<8x32xi1>
    %54 = arith.select %53, %46, %22 : vector<8x32xi1>, vector<8x32xf32>
    %55 = vector.shape_cast %51 : vector<8x1xi1> to vector<8x1xi1>
    %56 = vector.broadcast %55 : vector<8x1xi1> to vector<8x32xi1>
    %57 = arith.select %56, %44, %23 : vector<8x32xi1>, vector<8x32xf32>
    %c1_i32 = arith.constant 1 : i32
    %58 = arith.index_cast %c1_i32 : i32 to index
    %c0_23 = arith.constant 0 : index
    %c0_24 = arith.constant 0 : index
    %59 = vector.load %arg6[%58, %c0_23, %c0_24] : memref<8x8x128xf32, #tpu.memory_space<vmem>>, vector<1x8x128xf32>
    %60 = vector.shape_cast %59 : vector<1x8x128xf32> to vector<8x128xf32>
    %cst_25 = arith.constant dense<0.000000e+00> : vector<8x128xf32>
    %61 = tpu.matmul %54, %9, %cst_25 {dimension_numbers = #tpu.dot_dimension_numbers<[1], [0], [0], [1], [0, 0, 1, 1], [], []>} : vector<8x32xf32>, vector<32x128xf32>, vector<8x128xf32> -> vector<8x128xf32>
    %62 = arith.addf %60, %61 : vector<8x128xf32>
    %63 = arith.negf %62 : vector<8x128xf32>
    %64 = math.exp %63 : vector<8x128xf32>
    %cst_26 = arith.constant 1.000000e+00 : f32
    %65 = vector.broadcast %cst_26 : f32 to vector<8x128xf32>
    %66 = arith.addf %65, %64 : vector<8x128xf32>
    %67 = arith.divf %65, %66 : vector<8x128xf32>
    %68 = vector.broadcast %18 : vector<1x128xf32> to vector<8x128xf32>
    %69 = arith.mulf %67, %68 : vector<8x128xf32>
    %70 = vector.broadcast %21 : vector<1x128xf32> to vector<8x128xf32>
    %71 = arith.addf %69, %70 : vector<8x128xf32>
    %72 = vector.extract_strided_slice %71 {offsets = [0, 0], sizes = [8, 32], strides = [1, 1]} : vector<8x128xf32> to vector<8x32xf32>
    %73 = vector.extract_strided_slice %71 {offsets = [0, 32], sizes = [8, 32], strides = [1, 1]} : vector<8x128xf32> to vector<8x32xf32>
    %74 = vector.extract_strided_slice %71 {offsets = [0, 64], sizes = [8, 32], strides = [1, 1]} : vector<8x128xf32> to vector<8x32xf32>
    %75 = vector.extract_strided_slice %71 {offsets = [0, 96], sizes = [8, 32], strides = [1, 1]} : vector<8x128xf32> to vector<8x32xf32>
    %76 = arith.mulf %73, %57 : vector<8x32xf32>
    %77 = arith.mulf %72, %74 : vector<8x32xf32>
    %78 = arith.addf %76, %77 : vector<8x32xf32>
    %79 = math.tanh %78 : vector<8x32xf32>
    %80 = arith.mulf %75, %79 : vector<8x32xf32>
    %81 = arith.index_cast %c1_i32 : i32 to index
    %c0_27 = arith.constant 0 : index
    %c0_28 = arith.constant 0 : index
    %82 = vector.load %arg1[%81, %c0_27, %c0_28] : memref<8x8x1xf32, #tpu.memory_space<vmem>>, vector<1x8x1xf32>
    %83 = vector.shape_cast %82 : vector<1x8x1xf32> to vector<8x1xf32>
    %cst_29 = arith.constant 0.000000e+00 : f32
    %84 = vector.broadcast %cst_29 : f32 to vector<8x1xf32>
    %85 = arith.cmpf one, %83, %84 : vector<8x1xf32>
    %86 = vector.shape_cast %85 : vector<8x1xi1> to vector<8x1xi1>
    %87 = vector.broadcast %86 : vector<8x1xi1> to vector<8x32xi1>
    %88 = arith.select %87, %80, %54 : vector<8x32xi1>, vector<8x32xf32>
    %89 = vector.shape_cast %85 : vector<8x1xi1> to vector<8x1xi1>
    %90 = vector.broadcast %89 : vector<8x1xi1> to vector<8x32xi1>
    %91 = arith.select %90, %78, %57 : vector<8x32xi1>, vector<8x32xf32>
    %c2_i32 = arith.constant 2 : i32
    %92 = arith.index_cast %c2_i32 : i32 to index
    %c0_30 = arith.constant 0 : index
    %c0_31 = arith.constant 0 : index
    %93 = vector.load %arg6[%92, %c0_30, %c0_31] : memref<8x8x128xf32, #tpu.memory_space<vmem>>, vector<1x8x128xf32>
    %94 = vector.shape_cast %93 : vector<1x8x128xf32> to vector<8x128xf32>
    %cst_32 = arith.constant dense<0.000000e+00> : vector<8x128xf32>
    %95 = tpu.matmul %88, %9, %cst_32 {dimension_numbers = #tpu.dot_dimension_numbers<[1], [0], [0], [1], [0, 0, 1, 1], [], []>} : vector<8x32xf32>, vector<32x128xf32>, vector<8x128xf32> -> vector<8x128xf32>
    %96 = arith.addf %94, %95 : vector<8x128xf32>
    %97 = arith.negf %96 : vector<8x128xf32>
    %98 = math.exp %97 : vector<8x128xf32>
    %cst_33 = arith.constant 1.000000e+00 : f32
    %99 = vector.broadcast %cst_33 : f32 to vector<8x128xf32>
    %100 = arith.addf %99, %98 : vector<8x128xf32>
    %101 = arith.divf %99, %100 : vector<8x128xf32>
    %102 = vector.broadcast %18 : vector<1x128xf32> to vector<8x128xf32>
    %103 = arith.mulf %101, %102 : vector<8x128xf32>
    %104 = vector.broadcast %21 : vector<1x128xf32> to vector<8x128xf32>
    %105 = arith.addf %103, %104 : vector<8x128xf32>
    %106 = vector.extract_strided_slice %105 {offsets = [0, 0], sizes = [8, 32], strides = [1, 1]} : vector<8x128xf32> to vector<8x32xf32>
    %107 = vector.extract_strided_slice %105 {offsets = [0, 32], sizes = [8, 32], strides = [1, 1]} : vector<8x128xf32> to vector<8x32xf32>
    %108 = vector.extract_strided_slice %105 {offsets = [0, 64], sizes = [8, 32], strides = [1, 1]} : vector<8x128xf32> to vector<8x32xf32>
    %109 = vector.extract_strided_slice %105 {offsets = [0, 96], sizes = [8, 32], strides = [1, 1]} : vector<8x128xf32> to vector<8x32xf32>
    %110 = arith.mulf %107, %91 : vector<8x32xf32>
    %111 = arith.mulf %106, %108 : vector<8x32xf32>
    %112 = arith.addf %110, %111 : vector<8x32xf32>
    %113 = math.tanh %112 : vector<8x32xf32>
    %114 = arith.mulf %109, %113 : vector<8x32xf32>
    %115 = arith.index_cast %c2_i32 : i32 to index
    %c0_34 = arith.constant 0 : index
    %c0_35 = arith.constant 0 : index
    %116 = vector.load %arg1[%115, %c0_34, %c0_35] : memref<8x8x1xf32, #tpu.memory_space<vmem>>, vector<1x8x1xf32>
    %117 = vector.shape_cast %116 : vector<1x8x1xf32> to vector<8x1xf32>
    %cst_36 = arith.constant 0.000000e+00 : f32
    %118 = vector.broadcast %cst_36 : f32 to vector<8x1xf32>
    %119 = arith.cmpf one, %117, %118 : vector<8x1xf32>
    %120 = vector.shape_cast %119 : vector<8x1xi1> to vector<8x1xi1>
    %121 = vector.broadcast %120 : vector<8x1xi1> to vector<8x32xi1>
    %122 = arith.select %121, %114, %88 : vector<8x32xi1>, vector<8x32xf32>
    %123 = vector.shape_cast %119 : vector<8x1xi1> to vector<8x1xi1>
    %124 = vector.broadcast %123 : vector<8x1xi1> to vector<8x32xi1>
    %125 = arith.select %124, %112, %91 : vector<8x32xi1>, vector<8x32xf32>
    %c3_i32 = arith.constant 3 : i32
    %126 = arith.index_cast %c3_i32 : i32 to index
    %c0_37 = arith.constant 0 : index
    %c0_38 = arith.constant 0 : index
    %127 = vector.load %arg6[%126, %c0_37, %c0_38] : memref<8x8x128xf32, #tpu.memory_space<vmem>>, vector<1x8x128xf32>
    %128 = vector.shape_cast %127 : vector<1x8x128xf32> to vector<8x128xf32>
    %cst_39 = arith.constant dense<0.000000e+00> : vector<8x128xf32>
    %129 = tpu.matmul %122, %9, %cst_39 {dimension_numbers = #tpu.dot_dimension_numbers<[1], [0], [0], [1], [0, 0, 1, 1], [], []>} : vector<8x32xf32>, vector<32x128xf32>, vector<8x128xf32> -> vector<8x128xf32>
    %130 = arith.addf %128, %129 : vector<8x128xf32>
    %131 = arith.negf %130 : vector<8x128xf32>
    %132 = math.exp %131 : vector<8x128xf32>
    %cst_40 = arith.constant 1.000000e+00 : f32
    %133 = vector.broadcast %cst_40 : f32 to vector<8x128xf32>
    %134 = arith.addf %133, %132 : vector<8x128xf32>
    %135 = arith.divf %133, %134 : vector<8x128xf32>
    %136 = vector.broadcast %18 : vector<1x128xf32> to vector<8x128xf32>
    %137 = arith.mulf %135, %136 : vector<8x128xf32>
    %138 = vector.broadcast %21 : vector<1x128xf32> to vector<8x128xf32>
    %139 = arith.addf %137, %138 : vector<8x128xf32>
    %140 = vector.extract_strided_slice %139 {offsets = [0, 0], sizes = [8, 32], strides = [1, 1]} : vector<8x128xf32> to vector<8x32xf32>
    %141 = vector.extract_strided_slice %139 {offsets = [0, 32], sizes = [8, 32], strides = [1, 1]} : vector<8x128xf32> to vector<8x32xf32>
    %142 = vector.extract_strided_slice %139 {offsets = [0, 64], sizes = [8, 32], strides = [1, 1]} : vector<8x128xf32> to vector<8x32xf32>
    %143 = vector.extract_strided_slice %139 {offsets = [0, 96], sizes = [8, 32], strides = [1, 1]} : vector<8x128xf32> to vector<8x32xf32>
    %144 = arith.mulf %141, %125 : vector<8x32xf32>
    %145 = arith.mulf %140, %142 : vector<8x32xf32>
    %146 = arith.addf %144, %145 : vector<8x32xf32>
    %147 = math.tanh %146 : vector<8x32xf32>
    %148 = arith.mulf %143, %147 : vector<8x32xf32>
    %149 = arith.index_cast %c3_i32 : i32 to index
    %c0_41 = arith.constant 0 : index
    %c0_42 = arith.constant 0 : index
    %150 = vector.load %arg1[%149, %c0_41, %c0_42] : memref<8x8x1xf32, #tpu.memory_space<vmem>>, vector<1x8x1xf32>
    %151 = vector.shape_cast %150 : vector<1x8x1xf32> to vector<8x1xf32>
    %cst_43 = arith.constant 0.000000e+00 : f32
    %152 = vector.broadcast %cst_43 : f32 to vector<8x1xf32>
    %153 = arith.cmpf one, %151, %152 : vector<8x1xf32>
    %154 = vector.shape_cast %153 : vector<8x1xi1> to vector<8x1xi1>
    %155 = vector.broadcast %154 : vector<8x1xi1> to vector<8x32xi1>
    %156 = arith.select %155, %148, %122 : vector<8x32xi1>, vector<8x32xf32>
    %157 = vector.shape_cast %153 : vector<8x1xi1> to vector<8x1xi1>
    %158 = vector.broadcast %157 : vector<8x1xi1> to vector<8x32xi1>
    %159 = arith.select %158, %146, %125 : vector<8x32xi1>, vector<8x32xf32>
    %c4_i32 = arith.constant 4 : i32
    %160 = arith.index_cast %c4_i32 : i32 to index
    %c0_44 = arith.constant 0 : index
    %c0_45 = arith.constant 0 : index
    %161 = vector.load %arg6[%160, %c0_44, %c0_45] : memref<8x8x128xf32, #tpu.memory_space<vmem>>, vector<1x8x128xf32>
    %162 = vector.shape_cast %161 : vector<1x8x128xf32> to vector<8x128xf32>
    %cst_46 = arith.constant dense<0.000000e+00> : vector<8x128xf32>
    %163 = tpu.matmul %156, %9, %cst_46 {dimension_numbers = #tpu.dot_dimension_numbers<[1], [0], [0], [1], [0, 0, 1, 1], [], []>} : vector<8x32xf32>, vector<32x128xf32>, vector<8x128xf32> -> vector<8x128xf32>
    %164 = arith.addf %162, %163 : vector<8x128xf32>
    %165 = arith.negf %164 : vector<8x128xf32>
    %166 = math.exp %165 : vector<8x128xf32>
    %cst_47 = arith.constant 1.000000e+00 : f32
    %167 = vector.broadcast %cst_47 : f32 to vector<8x128xf32>
    %168 = arith.addf %167, %166 : vector<8x128xf32>
    %169 = arith.divf %167, %168 : vector<8x128xf32>
    %170 = vector.broadcast %18 : vector<1x128xf32> to vector<8x128xf32>
    %171 = arith.mulf %169, %170 : vector<8x128xf32>
    %172 = vector.broadcast %21 : vector<1x128xf32> to vector<8x128xf32>
    %173 = arith.addf %171, %172 : vector<8x128xf32>
    %174 = vector.extract_strided_slice %173 {offsets = [0, 0], sizes = [8, 32], strides = [1, 1]} : vector<8x128xf32> to vector<8x32xf32>
    %175 = vector.extract_strided_slice %173 {offsets = [0, 32], sizes = [8, 32], strides = [1, 1]} : vector<8x128xf32> to vector<8x32xf32>
    %176 = vector.extract_strided_slice %173 {offsets = [0, 64], sizes = [8, 32], strides = [1, 1]} : vector<8x128xf32> to vector<8x32xf32>
    %177 = vector.extract_strided_slice %173 {offsets = [0, 96], sizes = [8, 32], strides = [1, 1]} : vector<8x128xf32> to vector<8x32xf32>
    %178 = arith.mulf %175, %159 : vector<8x32xf32>
    %179 = arith.mulf %174, %176 : vector<8x32xf32>
    %180 = arith.addf %178, %179 : vector<8x32xf32>
    %181 = math.tanh %180 : vector<8x32xf32>
    %182 = arith.mulf %177, %181 : vector<8x32xf32>
    %183 = arith.index_cast %c4_i32 : i32 to index
    %c0_48 = arith.constant 0 : index
    %c0_49 = arith.constant 0 : index
    %184 = vector.load %arg1[%183, %c0_48, %c0_49] : memref<8x8x1xf32, #tpu.memory_space<vmem>>, vector<1x8x1xf32>
    %185 = vector.shape_cast %184 : vector<1x8x1xf32> to vector<8x1xf32>
    %cst_50 = arith.constant 0.000000e+00 : f32
    %186 = vector.broadcast %cst_50 : f32 to vector<8x1xf32>
    %187 = arith.cmpf one, %185, %186 : vector<8x1xf32>
    %188 = vector.shape_cast %187 : vector<8x1xi1> to vector<8x1xi1>
    %189 = vector.broadcast %188 : vector<8x1xi1> to vector<8x32xi1>
    %190 = arith.select %189, %182, %156 : vector<8x32xi1>, vector<8x32xf32>
    %191 = vector.shape_cast %187 : vector<8x1xi1> to vector<8x1xi1>
    %192 = vector.broadcast %191 : vector<8x1xi1> to vector<8x32xi1>
    %193 = arith.select %192, %180, %159 : vector<8x32xi1>, vector<8x32xf32>
    %c5_i32 = arith.constant 5 : i32
    %194 = arith.index_cast %c5_i32 : i32 to index
    %c0_51 = arith.constant 0 : index
    %c0_52 = arith.constant 0 : index
    %195 = vector.load %arg6[%194, %c0_51, %c0_52] : memref<8x8x128xf32, #tpu.memory_space<vmem>>, vector<1x8x128xf32>
    %196 = vector.shape_cast %195 : vector<1x8x128xf32> to vector<8x128xf32>
    %cst_53 = arith.constant dense<0.000000e+00> : vector<8x128xf32>
    %197 = tpu.matmul %190, %9, %cst_53 {dimension_numbers = #tpu.dot_dimension_numbers<[1], [0], [0], [1], [0, 0, 1, 1], [], []>} : vector<8x32xf32>, vector<32x128xf32>, vector<8x128xf32> -> vector<8x128xf32>
    %198 = arith.addf %196, %197 : vector<8x128xf32>
    %199 = arith.negf %198 : vector<8x128xf32>
    %200 = math.exp %199 : vector<8x128xf32>
    %cst_54 = arith.constant 1.000000e+00 : f32
    %201 = vector.broadcast %cst_54 : f32 to vector<8x128xf32>
    %202 = arith.addf %201, %200 : vector<8x128xf32>
    %203 = arith.divf %201, %202 : vector<8x128xf32>
    %204 = vector.broadcast %18 : vector<1x128xf32> to vector<8x128xf32>
    %205 = arith.mulf %203, %204 : vector<8x128xf32>
    %206 = vector.broadcast %21 : vector<1x128xf32> to vector<8x128xf32>
    %207 = arith.addf %205, %206 : vector<8x128xf32>
    %208 = vector.extract_strided_slice %207 {offsets = [0, 0], sizes = [8, 32], strides = [1, 1]} : vector<8x128xf32> to vector<8x32xf32>
    %209 = vector.extract_strided_slice %207 {offsets = [0, 32], sizes = [8, 32], strides = [1, 1]} : vector<8x128xf32> to vector<8x32xf32>
    %210 = vector.extract_strided_slice %207 {offsets = [0, 64], sizes = [8, 32], strides = [1, 1]} : vector<8x128xf32> to vector<8x32xf32>
    %211 = vector.extract_strided_slice %207 {offsets = [0, 96], sizes = [8, 32], strides = [1, 1]} : vector<8x128xf32> to vector<8x32xf32>
    %212 = arith.mulf %209, %193 : vector<8x32xf32>
    %213 = arith.mulf %208, %210 : vector<8x32xf32>
    %214 = arith.addf %212, %213 : vector<8x32xf32>
    %215 = math.tanh %214 : vector<8x32xf32>
    %216 = arith.mulf %211, %215 : vector<8x32xf32>
    %217 = arith.index_cast %c5_i32 : i32 to index
    %c0_55 = arith.constant 0 : index
    %c0_56 = arith.constant 0 : index
    %218 = vector.load %arg1[%217, %c0_55, %c0_56] : memref<8x8x1xf32, #tpu.memory_space<vmem>>, vector<1x8x1xf32>
    %219 = vector.shape_cast %218 : vector<1x8x1xf32> to vector<8x1xf32>
    %cst_57 = arith.constant 0.000000e+00 : f32
    %220 = vector.broadcast %cst_57 : f32 to vector<8x1xf32>
    %221 = arith.cmpf one, %219, %220 : vector<8x1xf32>
    %222 = vector.shape_cast %221 : vector<8x1xi1> to vector<8x1xi1>
    %223 = vector.broadcast %222 : vector<8x1xi1> to vector<8x32xi1>
    %224 = arith.select %223, %216, %190 : vector<8x32xi1>, vector<8x32xf32>
    %225 = vector.shape_cast %221 : vector<8x1xi1> to vector<8x1xi1>
    %226 = vector.broadcast %225 : vector<8x1xi1> to vector<8x32xi1>
    %227 = arith.select %226, %214, %193 : vector<8x32xi1>, vector<8x32xf32>
    %c6_i32 = arith.constant 6 : i32
    %228 = arith.index_cast %c6_i32 : i32 to index
    %c0_58 = arith.constant 0 : index
    %c0_59 = arith.constant 0 : index
    %229 = vector.load %arg6[%228, %c0_58, %c0_59] : memref<8x8x128xf32, #tpu.memory_space<vmem>>, vector<1x8x128xf32>
    %230 = vector.shape_cast %229 : vector<1x8x128xf32> to vector<8x128xf32>
    %cst_60 = arith.constant dense<0.000000e+00> : vector<8x128xf32>
    %231 = tpu.matmul %224, %9, %cst_60 {dimension_numbers = #tpu.dot_dimension_numbers<[1], [0], [0], [1], [0, 0, 1, 1], [], []>} : vector<8x32xf32>, vector<32x128xf32>, vector<8x128xf32> -> vector<8x128xf32>
    %232 = arith.addf %230, %231 : vector<8x128xf32>
    %233 = arith.negf %232 : vector<8x128xf32>
    %234 = math.exp %233 : vector<8x128xf32>
    %cst_61 = arith.constant 1.000000e+00 : f32
    %235 = vector.broadcast %cst_61 : f32 to vector<8x128xf32>
    %236 = arith.addf %235, %234 : vector<8x128xf32>
    %237 = arith.divf %235, %236 : vector<8x128xf32>
    %238 = vector.broadcast %18 : vector<1x128xf32> to vector<8x128xf32>
    %239 = arith.mulf %237, %238 : vector<8x128xf32>
    %240 = vector.broadcast %21 : vector<1x128xf32> to vector<8x128xf32>
    %241 = arith.addf %239, %240 : vector<8x128xf32>
    %242 = vector.extract_strided_slice %241 {offsets = [0, 0], sizes = [8, 32], strides = [1, 1]} : vector<8x128xf32> to vector<8x32xf32>
    %243 = vector.extract_strided_slice %241 {offsets = [0, 32], sizes = [8, 32], strides = [1, 1]} : vector<8x128xf32> to vector<8x32xf32>
    %244 = vector.extract_strided_slice %241 {offsets = [0, 64], sizes = [8, 32], strides = [1, 1]} : vector<8x128xf32> to vector<8x32xf32>
    %245 = vector.extract_strided_slice %241 {offsets = [0, 96], sizes = [8, 32], strides = [1, 1]} : vector<8x128xf32> to vector<8x32xf32>
    %246 = arith.mulf %243, %227 : vector<8x32xf32>
    %247 = arith.mulf %242, %244 : vector<8x32xf32>
    %248 = arith.addf %246, %247 : vector<8x32xf32>
    %249 = math.tanh %248 : vector<8x32xf32>
    %250 = arith.mulf %245, %249 : vector<8x32xf32>
    %251 = arith.index_cast %c6_i32 : i32 to index
    %c0_62 = arith.constant 0 : index
    %c0_63 = arith.constant 0 : index
    %252 = vector.load %arg1[%251, %c0_62, %c0_63] : memref<8x8x1xf32, #tpu.memory_space<vmem>>, vector<1x8x1xf32>
    %253 = vector.shape_cast %252 : vector<1x8x1xf32> to vector<8x1xf32>
    %cst_64 = arith.constant 0.000000e+00 : f32
    %254 = vector.broadcast %cst_64 : f32 to vector<8x1xf32>
    %255 = arith.cmpf one, %253, %254 : vector<8x1xf32>
    %256 = vector.shape_cast %255 : vector<8x1xi1> to vector<8x1xi1>
    %257 = vector.broadcast %256 : vector<8x1xi1> to vector<8x32xi1>
    %258 = arith.select %257, %250, %224 : vector<8x32xi1>, vector<8x32xf32>
    %259 = vector.shape_cast %255 : vector<8x1xi1> to vector<8x1xi1>
    %260 = vector.broadcast %259 : vector<8x1xi1> to vector<8x32xi1>
    %261 = arith.select %260, %248, %227 : vector<8x32xi1>, vector<8x32xf32>
    %c7_i32 = arith.constant 7 : i32
    %262 = arith.index_cast %c7_i32 : i32 to index
    %c0_65 = arith.constant 0 : index
    %c0_66 = arith.constant 0 : index
    %263 = vector.load %arg6[%262, %c0_65, %c0_66] : memref<8x8x128xf32, #tpu.memory_space<vmem>>, vector<1x8x128xf32>
    %264 = vector.shape_cast %263 : vector<1x8x128xf32> to vector<8x128xf32>
    %cst_67 = arith.constant dense<0.000000e+00> : vector<8x128xf32>
    %265 = tpu.matmul %258, %9, %cst_67 {dimension_numbers = #tpu.dot_dimension_numbers<[1], [0], [0], [1], [0, 0, 1, 1], [], []>} : vector<8x32xf32>, vector<32x128xf32>, vector<8x128xf32> -> vector<8x128xf32>
    %266 = arith.addf %264, %265 : vector<8x128xf32>
    %267 = arith.negf %266 : vector<8x128xf32>
    %268 = math.exp %267 : vector<8x128xf32>
    %cst_68 = arith.constant 1.000000e+00 : f32
    %269 = vector.broadcast %cst_68 : f32 to vector<8x128xf32>
    %270 = arith.addf %269, %268 : vector<8x128xf32>
    %271 = arith.divf %269, %270 : vector<8x128xf32>
    %272 = vector.broadcast %18 : vector<1x128xf32> to vector<8x128xf32>
    %273 = arith.mulf %271, %272 : vector<8x128xf32>
    %274 = vector.broadcast %21 : vector<1x128xf32> to vector<8x128xf32>
    %275 = arith.addf %273, %274 : vector<8x128xf32>
    %276 = vector.extract_strided_slice %275 {offsets = [0, 0], sizes = [8, 32], strides = [1, 1]} : vector<8x128xf32> to vector<8x32xf32>
    %277 = vector.extract_strided_slice %275 {offsets = [0, 32], sizes = [8, 32], strides = [1, 1]} : vector<8x128xf32> to vector<8x32xf32>
    %278 = vector.extract_strided_slice %275 {offsets = [0, 64], sizes = [8, 32], strides = [1, 1]} : vector<8x128xf32> to vector<8x32xf32>
    %279 = vector.extract_strided_slice %275 {offsets = [0, 96], sizes = [8, 32], strides = [1, 1]} : vector<8x128xf32> to vector<8x32xf32>
    %280 = arith.mulf %277, %261 : vector<8x32xf32>
    %281 = arith.mulf %276, %278 : vector<8x32xf32>
    %282 = arith.addf %280, %281 : vector<8x32xf32>
    %283 = math.tanh %282 : vector<8x32xf32>
    %284 = arith.mulf %279, %283 : vector<8x32xf32>
    %285 = arith.index_cast %c7_i32 : i32 to index
    %c0_69 = arith.constant 0 : index
    %c0_70 = arith.constant 0 : index
    %286 = vector.load %arg1[%285, %c0_69, %c0_70] : memref<8x8x1xf32, #tpu.memory_space<vmem>>, vector<1x8x1xf32>
    %287 = vector.shape_cast %286 : vector<1x8x1xf32> to vector<8x1xf32>
    %cst_71 = arith.constant 0.000000e+00 : f32
    %288 = vector.broadcast %cst_71 : f32 to vector<8x1xf32>
    %289 = arith.cmpf one, %287, %288 : vector<8x1xf32>
    %290 = vector.shape_cast %289 : vector<8x1xi1> to vector<8x1xi1>
    %291 = vector.broadcast %290 : vector<8x1xi1> to vector<8x32xi1>
    %292 = arith.select %291, %284, %258 : vector<8x32xi1>, vector<8x32xf32>
    %293 = vector.shape_cast %289 : vector<8x1xi1> to vector<8x1xi1>
    %294 = vector.broadcast %293 : vector<8x1xi1> to vector<8x32xi1>
    %295 = arith.select %294, %282, %261 : vector<8x32xi1>, vector<8x32xf32>
    %c8_i32 = arith.constant 8 : i32
    %c0_72 = arith.constant 0 : index
    %c0_73 = arith.constant 0 : index
    %296 = vector.load %arg5[%c0_72, %c0_73] : memref<8x32xf32, #tpu.memory_space<vmem>>, vector<8x32xf32>
    tpu.vector_store %arg5[%c0_72, %c0_73], %292 {strides = array<i32>} : memref<8x32xf32, #tpu.memory_space<vmem>>, vector<8x32xf32>,
    return
  }
}

</mosaic_0001>

<llo_original>
// kernel: tpu_custom_call.1
$region0: #{tpu_custom_call.1}
  #allocation0 [shape = 'u32[]', space=smem, size = 0x4, offset = 0x4, fixed_abs, tag = 'smem constant byte address 0x4 - core index']
  #allocation1 [shape = 'u32[144,128]{1,0:T(1,128)}', space=vmem, size = 0x12000, scoped, tag = 'internal scratch']
  #allocation2 [shape = 'f32[8,8,128]{2,1,0:T(8,128)}', space=vmem, size = 0x8000, scoped, tag = 'scratch operand']
  %s0 = inlined_call_operand.vmem [shape: f32[64,32], index: 0, kind: input, shape index: {}]
  %s1 = inlined_call_operand.vmem [shape: f32[8,8,1], index: 1, kind: input, shape index: {}]
  %s2 = inlined_call_operand.vmem [shape: f32[32,128], index: 2, kind: input, shape index: {}]
  %s3 = inlined_call_operand.vmem [shape: f32[32,128], index: 3, kind: input, shape index: {}]
  %s4 = inlined_call_operand.vmem [shape: f32[1,128], index: 4, kind: input, shape index: {}]
  %s5 = inlined_call_operand.hbm [shape: f32[8,32], index: 5, kind: output, shape index: {}]
  %s6 = sld [smem:[#allocation0]]
  $region30: #{tpu_custom_call.1} parent=0
    _
  %s8 = ssub.s32 1, %s6
  %s9 = scalar_select 0, %s8, %s6
  $region1: #{tpu_custom_call.1} parent=0
    #allocation3 [shape = 'u8[4096]{0}', space=vmem, size = 0x1000, scoped, tag = 'output window, operand 0, single buffered']
    #allocation4 [shape = 's32[1]{0}', space=sflag, size = 0x4, scoped, tag = 'scoped memory for tpu_custom_call.1']
    %10 = vsyncpa [#allocation4], 0
    // Predicated region
    $region2: #{tpu_custom_call.1} parent=1 // pred_check
      _
    $region3: #{tpu_custom_call.1} parent=1 // pred_check_branch
      %12 = sbr.rel (0) target = $region5
    $region4: #{tpu_custom_call.1} parent=1 // pred_region
      _
    $region5: #{tpu_custom_call.1} parent=1 // pred_fallthru
      _
    // Predicated region
    $region6: #{tpu_custom_call.1} parent=1 // pred_check
      _
    $region7: #{tpu_custom_call.1} parent=1 // pred_check_branch
      %14 = sbr.rel (0) target = $region9
    $region8: #{tpu_custom_call.1} parent=1 // pred_region
      _
    $region9: #{tpu_custom_call.1} parent=1 // pred_fallthru
      _
    // Predicated region
    $region10: #{tpu_custom_call.1} parent=1 // pred_check
      _
    $region11: #{tpu_custom_call.1} parent=1 // pred_check_branch
      %16 = sbr.rel (0) target = $region13
    $region12: #{tpu_custom_call.1} parent=1 // pred_region
      _
    $region13: #{tpu_custom_call.1} parent=1 // pred_fallthru
      _
    // Predicated region
    $region14: #{tpu_custom_call.1} parent=1 // pred_check
      _
    $region15: #{tpu_custom_call.1} parent=1 // pred_check_branch
      %18 = sbr.rel (0) target = $region17
    $region16: #{tpu_custom_call.1} parent=1 // pred_region
      _
    $region17: #{tpu_custom_call.1} parent=1 // pred_fallthru
      _
    // Predicated region
    $region18: #{tpu_custom_call.1} parent=1 // pred_check
      _
    $region19: #{tpu_custom_call.1} parent=1 // pred_check_branch
      %20 = sbr.rel (0) target = $region21
    $region20: #{tpu_custom_call.1} parent=1 // pred_region
      _
    $region21: #{tpu_custom_call.1} parent=1 // pred_fallthru
      _
    %v21 = vld [vmem:[%s0] sm:$0xff]
    %v22 = vld [vmem:[%s0 + $0x8] sm:$0xff]
    %v23 = vld [vmem:[%s0 + $0x10] sm:$0xff]
    %v24 = vld [vmem:[%s0 + $0x18] sm:$0xff]
    %v25 = vld [vmem:[%s0 + $0x20] sm:$0xff]
    %v26 = vld [vmem:[%s0 + $0x28] sm:$0xff]
    %v27 = vld [vmem:[%s0 + $0x30] sm:$0xff]
    %v28 = vld [vmem:[%s0 + $0x38] sm:$0xff]
    %v29 = vld [vmem:[%s2] sm:$0xff]
    %v30 = vld [vmem:[%s2 + $0x8] sm:$0xff]
    %v31 = vld [vmem:[%s2 + $0x10] sm:$0xff]
    %v32 = vld [vmem:[%s2 + $0x18] sm:$0xff]
    %vm33 = vcmask 261120
    %v35 = vsel %vm33, %v21, 0
    %v38 = vsel %vm33, %v22, 0
    %v41 = vsel %vm33, %v23, 0
    %v44 = vsel %vm33, %v24, 0
    %v47 = vsel %vm33, %v25, 0
    %v50 = vsel %vm33, %v26, 0
    %v53 = vsel %vm33, %v27, 0
    %v56 = vsel %vm33, %v28, 0
    %58 = vmatprep.subr.mxu0 0.0
    %59 = vmatpush1.msra.mxu0 %v29
    %60 = vmatprep.subr.mxu0 0.0
    %61 = vmatpush1.msra.mxu0 %v30
    %62 = vmatprep.subr.mxu0 0.0
    %63 = vmatpush1.msra.mxu0 %v31
    %64 = vmatprep.subr.mxu0 0.0
    %65 = vmatpush1.msra.mxu0 %v32
    %66 = vmatprep.subr.mxu0 0.0
    %67 = vmatpush1.msra.mxu0 0.0
    %68 = vmatprep.subr.mxu0 0.0
    %69 = vmatpush1.msra.mxu0 0.0
    %70 = vmatprep.subr.mxu0 0.0
    %71 = vmatpush1.msra.mxu0 0.0
    %72 = vmatprep.subr.mxu0 0.0
    %73 = vmatpush1.msra.mxu0 0.0
    %74 = vmatprep.subr.mxu0 0.0
    %75 = vmatpush1.msra.mxu0 0.0
    %76 = vmatprep.subr.mxu0 0.0
    %77 = vmatpush1.msra.mxu0 0.0
    %78 = vmatprep.subr.mxu0 0.0
    %79 = vmatpush1.msra.mxu0 0.0
    %80 = vmatprep.subr.mxu0 0.0
    %81 = vmatpush1.msra.mxu0 0.0
    %82 = vmatprep.subr.mxu0 0.0
    %83 = vmatpush1.msra.mxu0 0.0
    %84 = vmatprep.subr.mxu0 0.0
    %85 = vmatpush1.msra.mxu0 0.0
    %86 = vmatprep.subr.mxu0 0.0
    %87 = vmatpush1.msra.mxu0 0.0
    %88 = vmatprep.subr.mxu0 0.0
    %89 = vmatpush1.msra.mxu0 0.0
    %90 = vmatprep.subr.mxu0 0.0
    %91 = vmatpush1.msra.mxu0 0.0
    %92 = vmatprep.subr.mxu0 0.0
    %93 = vmatpush1.msra.mxu0 0.0
    %94 = vmatprep.subr.mxu0 0.0
    %95 = vmatpush1.msra.mxu0 0.0
    %96 = vmatprep.subr.mxu0 0.0
    %97 = vmatpush1.msra.mxu0 0.0
    %98 = vmatprep.subr.mxu0 0.0
    %99 = vmatpush1.msra.mxu0 0.0
    %100 = vmatprep.subr.mxu0 0.0
    %101 = vmatpush1.msra.mxu0 0.0
    %102 = vmatprep.subr.mxu0 0.0
    %103 = vmatpush1.msra.mxu0 0.0
    %104 = vmatprep.subr.mxu0 0.0
    %105 = vmatpush1.msra.mxu0 0.0
    %106 = vmatprep.subr.mxu0 0.0
    %107 = vmatpush1.msra.mxu0 0.0
    %108 = vmatprep.subr.mxu0 0.0
    %109 = vmatpush1.msra.mxu0 0.0
    %110 = vmatprep.subr.mxu0 0.0
    %111 = vmatpush1.msra.mxu0 0.0
    %112 = vmatprep.subr.mxu0 0.0
    %113 = vmatpush1.msra.mxu0 0.0
    %114 = vmatprep.subr.mxu0 0.0
    %115 = vmatpush1.msra.mxu0 0.0
    %116 = vmatprep.subr.mxu0 0.0
    %117 = vmatpush1.msra.mxu0 0.0
    %118 = vmatprep.subr.mxu0 0.0
    %119 = vmatpush1.msra.mxu0 0.0
    %120 = vmatprep.subr.mxu0 0.0
    %121 = vmatpush1.msra.mxu0 0.0
    %122 = vmatprep.mubr.f32.mxu0 0.0
    %123 = vmatmul.mubr.f32.gmra.mrb[0].mxu0 %v35
    %v124 = vpop.f32.mrb[0].mxu0
    %v125 = vadd.f32 0.0, %v124
    %v126 = vpop.f32.mrb[0].mxu0
    %127 = vmatprep.mubr.f32.mxu0 0.0
    %128 = vmatmul.mubr.f32.gmra.mrb[0].mxu0 %v38
    %v129 = vpop.f32.mrb[0].mxu0
    %v130 = vadd.f32 0.0, %v129
    %v131 = vpop.f32.mrb[0].mxu0
    %132 = vmatprep.mubr.f32.mxu0 0.0
    %133 = vmatmul.mubr.f32.gmra.mrb[0].mxu0 %v41
    %v134 = vpop.f32.mrb[0].mxu0
    %v135 = vadd.f32 0.0, %v134
    %v136 = vpop.f32.mrb[0].mxu0
    %137 = vmatprep.mubr.f32.mxu0 0.0
    %138 = vmatmul.mubr.f32.gmra.mrb[0].mxu0 %v44
    %v139 = vpop.f32.mrb[0].mxu0
    %v140 = vadd.f32 0.0, %v139
    %v141 = vpop.f32.mrb[0].mxu0
    %142 = vmatprep.mubr.f32.mxu0 0.0
    %143 = vmatmul.mubr.f32.gmra.mrb[0].mxu0 %v47
    %v144 = vpop.f32.mrb[0].mxu0
    %v145 = vadd.f32 0.0, %v144
    %v146 = vpop.f32.mrb[0].mxu0
    %147 = vmatprep.mubr.f32.mxu0 0.0
    %148 = vmatmul.mubr.f32.gmra.mrb[0].mxu0 %v50
    %v149 = vpop.f32.mrb[0].mxu0
    %v150 = vadd.f32 0.0, %v149
    %v151 = vpop.f32.mrb[0].mxu0
    %152 = vmatprep.mubr.f32.mxu0 0.0
    %153 = vmatmul.mubr.f32.gmra.mrb[0].mxu0 %v53
    %v154 = vpop.f32.mrb[0].mxu0
    %v155 = vadd.f32 0.0, %v154
    %v156 = vpop.f32.mrb[0].mxu0
    %157 = vmatprep.mubr.f32.mxu0 0.0
    %158 = vmatmul.mubr.f32.gmra.mrb[0].mxu0 %v56
    %v159 = vpop.f32.mrb[0].mxu0
    %v160 = vadd.f32 0.0, %v159
    %v161 = vpop.f32.mrb[0].mxu0
    %162 = vdwg.mxu0
    %v163 = vld [vmem:[%s4] sm:$0x1]
    %v165 = vlaneseq
    %v166 = vshrl.u32 %v165, 7
    %v167 = vsub.s32 0, %v166
    %v168 = vrot.slane %v163, %v167
    %v170 = vadd.f32 %v125, %v168
    %v171 = vadd.f32 %v130, %v168
    %v172 = vadd.f32 %v135, %v168
    %v173 = vadd.f32 %v140, %v168
    %v174 = vadd.f32 %v145, %v168
    %v175 = vadd.f32 %v150, %v168
    %v176 = vadd.f32 %v155, %v168
    %v177 = vadd.f32 %v160, %v168
    %178 = vst [vmem:[#allocation2] sm:$0xff] %v170
    %179 = vst [vmem:[#allocation2 + $0x8] sm:$0xff] %v171
    %180 = vst [vmem:[#allocation2 + $0x10] sm:$0xff] %v172
    %181 = vst [vmem:[#allocation2 + $0x18] sm:$0xff] %v173
    %182 = vst [vmem:[#allocation2 + $0x20] sm:$0xff] %v174
    %183 = vst [vmem:[#allocation2 + $0x28] sm:$0xff] %v175
    %184 = vst [vmem:[#allocation2 + $0x30] sm:$0xff] %v176
    %185 = vst [vmem:[#allocation2 + $0x38] sm:$0xff] %v177
    %v186 = vld [vmem:[%s3] sm:$0xff]
    %v187 = vld [vmem:[%s3 + $0x8] sm:$0xff]
    %v188 = vld [vmem:[%s3 + $0x10] sm:$0xff]
    %v189 = vld [vmem:[%s3 + $0x18] sm:$0xff]
    %v190 = vlaneseq
    %v191 = vand.u32 %v190, 127
    %vm192 = vcmp.ge.s32.totalorder %v191, 64
    %vm193 = vcmp.lt.s32.totalorder %v191, 96
    %vm194 = vmand %vm192, %vm193
    %v195 = vsel %vm194, 2.0, 1.0
    %v196 = vsel %vm194, -1.0, 0.0
    %v197 = vld [vmem:[#allocation2] sm:$0xff]
    %v199 = vsel %vm33, 0.0, 0
    %201 = vmatprep.subr.mxu0 0.0
    %202 = vmatpush1.msra.mxu0 %v186
    %203 = vmatprep.subr.mxu0 0.0
    %204 = vmatpush1.msra.mxu0 %v187
    %205 = vmatprep.subr.mxu0 0.0
    %206 = vmatpush1.msra.mxu0 %v188
    %207 = vmatprep.subr.mxu0 0.0
    %208 = vmatpush1.msra.mxu0 %v189
    %209 = vmatprep.subr.mxu0 0.0
    %210 = vmatpush1.msra.mxu0 0.0
    %211 = vmatprep.subr.mxu0 0.0
    %212 = vmatpush1.msra.mxu0 0.0
    %213 = vmatprep.subr.mxu0 0.0
    %214 = vmatpush1.msra.mxu0 0.0
    %215 = vmatprep.subr.mxu0 0.0
    %216 = vmatpush1.msra.mxu0 0.0
    %217 = vmatprep.subr.mxu0 0.0
    %218 = vmatpush1.msra.mxu0 0.0
    %219 = vmatprep.subr.mxu0 0.0
    %220 = vmatpush1.msra.mxu0 0.0
    %221 = vmatprep.subr.mxu0 0.0
    %222 = vmatpush1.msra.mxu0 0.0
    %223 = vmatprep.subr.mxu0 0.0
    %224 = vmatpush1.msra.mxu0 0.0
    %225 = vmatprep.subr.mxu0 0.0
    %226 = vmatpush1.msra.mxu0 0.0
    %227 = vmatprep.subr.mxu0 0.0
    %228 = vmatpush1.msra.mxu0 0.0
    %229 = vmatprep.subr.mxu0 0.0
    %230 = vmatpush1.msra.mxu0 0.0
    %231 = vmatprep.subr.mxu0 0.0
    %232 = vmatpush1.msra.mxu0 0.0
    %233 = vmatprep.subr.mxu0 0.0
    %234 = vmatpush1.msra.mxu0 0.0
    %235 = vmatprep.subr.mxu0 0.0
    %236 = vmatpush1.msra.mxu0 0.0
    %237 = vmatprep.subr.mxu0 0.0
    %238 = vmatpush1.msra.mxu0 0.0
    %239 = vmatprep.subr.mxu0 0.0
    %240 = vmatpush1.msra.mxu0 0.0
    %241 = vmatprep.subr.mxu0 0.0
    %242 = vmatpush1.msra.mxu0 0.0
    %243 = vmatprep.subr.mxu0 0.0
    %244 = vmatpush1.msra.mxu0 0.0
    %245 = vmatprep.subr.mxu0 0.0
    %246 = vmatpush1.msra.mxu0 0.0
    %247 = vmatprep.subr.mxu0 0.0
    %248 = vmatpush1.msra.mxu0 0.0
    %249 = vmatprep.subr.mxu0 0.0
    %250 = vmatpush1.msra.mxu0 0.0
    %251 = vmatprep.subr.mxu0 0.0
    %252 = vmatpush1.msra.mxu0 0.0
    %253 = vmatprep.subr.mxu0 0.0
    %254 = vmatpush1.msra.mxu0 0.0
    %255 = vmatprep.subr.mxu0 0.0
    %256 = vmatpush1.msra.mxu0 0.0
    %257 = vmatprep.subr.mxu0 0.0
    %258 = vmatpush1.msra.mxu0 0.0
    %259 = vmatprep.subr.mxu0 0.0
    %260 = vmatpush1.msra.mxu0 0.0
    %261 = vmatprep.subr.mxu0 0.0
    %262 = vmatpush1.msra.mxu0 0.0
    %263 = vmatprep.subr.mxu0 0.0
    %264 = vmatpush1.msra.mxu0 0.0
    %265 = vmatprep.mubr.f32.mxu0 0.0
    %266 = vmatmul.mubr.f32.gmra.mrb[0].mxu0 %v199
    %v267 = vpop.f32.mrb[0].mxu0
    %v268 = vadd.f32 0.0, %v267
    %v269 = vpop.f32.mrb[0].mxu0
    %270 = vdwg.mxu0
    %v271 = vadd.f32 %v197, %v268
    %v272 = vxor.u32 %v271, 2147483648
    %v273 = vmul.f32 %v272, 1.442695
    %v274 = vpow.pop %v273
    %v275 = vadd.f32 %v274, 1.0
    %v276 = vrcp.pop %v275
    %v277 = vmul.f32 1.0, %v276
    %v278 = vmul.f32 %v277, %v195
    %v279 = vadd.f32 %v278, %v196
    %v280 = vmul.f32 %v279, 0.0
    %282 = vrot.lane.b32.xlu0 %v279, 64
    %v283 = vpop.permute.xlu0 %282
    %v285 = vmul.f32 %v279, %v283
    %287 = vrot.lane.b32.xlu0 %v285, 32
    %v288 = vpop.permute.xlu0 %287
    %v290 = vadd.f32 %v280, %v288
    %v291 = vtanh.pop %v290
    %293 = vrot.lane.b32.xlu0 %v291, 64
    %v294 = vpop.permute.xlu0 %293
    %v296 = vmul.f32 %v279, %v294
    %v297 = vld [vmem:[%s1] sm:$0xff]
    %vm298 = vcmp.ne.f32.partialorder %v297, 0.0
    %v299 = vsel %vm298, 1, 0
    %300 = vset.pattern.permute.xlu0 0
    %301 = vperm.xlu0 %300, %v299
    %v302 = vpop.permute.xlu0 %301
    %vm303 = vcmp.eq.s32.totalorder %v302, 1
    %v304 = vsel %vm303, %v296, 0.0
    %v305 = vsel %vm303, %v290, 0.0
    %s306 = scalar_lea.vmem [#allocation2], 8
    %v307 = vld [vmem:[%s306] sm:$0xff]
    %309 = vrot.lane.b32.xlu0 %v304, 32
    %v310 = vpop.permute.xlu0 %309
    %v311 = vsel %vm33, %v310, 0
    %313 = vmatprep.subr.mxu0 0.0
    %314 = vmatpush1.msra.mxu0 %v186
    %315 = vmatprep.subr.mxu0 0.0
    %316 = vmatpush1.msra.mxu0 %v187
    %317 = vmatprep.subr.mxu0 0.0
    %318 = vmatpush1.msra.mxu0 %v188
    %319 = vmatprep.subr.mxu0 0.0
    %320 = vmatpush1.msra.mxu0 %v189
    %321 = vmatprep.subr.mxu0 0.0
    %322 = vmatpush1.msra.mxu0 0.0
    %323 = vmatprep.subr.mxu0 0.0
    %324 = vmatpush1.msra.mxu0 0.0
    %325 = vmatprep.subr.mxu0 0.0
    %326 = vmatpush1.msra.mxu0 0.0
    %327 = vmatprep.subr.mxu0 0.0
    %328 = vmatpush1.msra.mxu0 0.0
    %329 = vmatprep.subr.mxu0 0.0
    %330 = vmatpush1.msra.mxu0 0.0
    %331 = vmatprep.subr.mxu0 0.0
    %332 = vmatpush1.msra.mxu0 0.0
    %333 = vmatprep.subr.mxu0 0.0
    %334 = vmatpush1.msra.mxu0 0.0
    %335 = vmatprep.subr.mxu0 0.0
    %336 = vmatpush1.msra.mxu0 0.0
    %337 = vmatprep.subr.mxu0 0.0
    %338 = vmatpush1.msra.mxu0 0.0
    %339 = vmatprep.subr.mxu0 0.0
    %340 = vmatpush1.msra.mxu0 0.0
    %341 = vmatprep.subr.mxu0 0.0
    %342 = vmatpush1.msra.mxu0 0.0
    %343 = vmatprep.subr.mxu0 0.0
    %344 = vmatpush1.msra.mxu0 0.0
    %345 = vmatprep.subr.mxu0 0.0
    %346 = vmatpush1.msra.mxu0 0.0
    %347 = vmatprep.subr.mxu0 0.0
    %348 = vmatpush1.msra.mxu0 0.0
    %349 = vmatprep.subr.mxu0 0.0
    %350 = vmatpush1.msra.mxu0 0.0
    %351 = vmatprep.subr.mxu0 0.0
    %352 = vmatpush1.msra.mxu0 0.0
    %353 = vmatprep.subr.mxu0 0.0
    %354 = vmatpush1.msra.mxu0 0.0
    %355 = vmatprep.subr.mxu0 0.0
    %356 = vmatpush1.msra.mxu0 0.0
    %357 = vmatprep.subr.mxu0 0.0
    %358 = vmatpush1.msra.mxu0 0.0
    %359 = vmatprep.subr.mxu0 0.0
    %360 = vmatpush1.msra.mxu0 0.0
    %361 = vmatprep.subr.mxu0 0.0
    %362 = vmatpush1.msra.mxu0 0.0
    %363 = vmatprep.subr.mxu0 0.0
    %364 = vmatpush1.msra.mxu0 0.0
    %365 = vmatprep.subr.mxu0 0.0
    %366 = vmatpush1.msra.mxu0 0.0
    %367 = vmatprep.subr.mxu0 0.0
    %368 = vmatpush1.msra.mxu0 0.0
    %369 = vmatprep.subr.mxu0 0.0
    %370 = vmatpush1.msra.mxu0 0.0
    %371 = vmatprep.subr.mxu0 0.0
    %372 = vmatpush1.msra.mxu0 0.0
    %373 = vmatprep.subr.mxu0 0.0
    %374 = vmatpush1.msra.mxu0 0.0
    %375 = vmatprep.subr.mxu0 0.0
    %376 = vmatpush1.msra.mxu0 0.0
    %377 = vmatprep.mubr.f32.mxu0 0.0
    %378 = vmatmul.mubr.f32.gmra.mrb[0].mxu0 %v311
    %v379 = vpop.f32.mrb[0].mxu0
    %v380 = vadd.f32 0.0, %v379
    %v381 = vpop.f32.mrb[0].mxu0
    %382 = vdwg.mxu0
    %v383 = vadd.f32 %v307, %v380
    %v384 = vxor.u32 %v383, 2147483648
    %v385 = vmul.f32 %v384, 1.442695
    %v386 = vpow.pop %v385
    %v387 = vadd.f32 %v386, 1.0
    %v388 = vrcp.pop %v387
    %v389 = vmul.f32 1.0, %v388
    %v390 = vmul.f32 %v389, %v195
    %v391 = vadd.f32 %v390, %v196
    %v392 = vmul.f32 %v391, %v305
    %394 = vrot.lane.b32.xlu0 %v391, 64
    %v395 = vpop.permute.xlu0 %394
    %v397 = vmul.f32 %v391, %v395
    %399 = vrot.lane.b32.xlu0 %v397, 32
    %v400 = vpop.permute.xlu0 %399
    %v402 = vadd.f32 %v392, %v400
    %v403 = vtanh.pop %v402
    %405 = vrot.lane.b32.xlu0 %v403, 64
    %v406 = vpop.permute.xlu0 %405
    %v408 = vmul.f32 %v391, %v406
    %s409 = scalar_lea.vmem %s1, 8
    %v410 = vld [vmem:[%s409] sm:$0xff]
    %vm411 = vcmp.ne.f32.partialorder %v410, 0.0
    %v412 = vsel %vm411, 1, 0
    %413 = vset.pattern.permute.xlu0 0
    %414 = vperm.xlu0 %413, %v412
    %v415 = vpop.permute.xlu0 %414
    %vm416 = vcmp.eq.s32.totalorder %v415, 1
    %v417 = vsel %vm416, %v408, %v304
    %v418 = vsel %vm416, %v402, %v305
    %s419 = scalar_lea.vmem [#allocation2], 16
    %v420 = vld [vmem:[%s419] sm:$0xff]
    %422 = vrot.lane.b32.xlu0 %v417, 32
    %v423 = vpop.permute.xlu0 %422
    %v424 = vsel %vm33, %v423, 0
    %426 = vmatprep.subr.mxu0 0.0
    %427 = vmatpush1.msra.mxu0 %v186
    %428 = vmatprep.subr.mxu0 0.0
    %429 = vmatpush1.msra.mxu0 %v187
    %430 = vmatprep.subr.mxu0 0.0
    %431 = vmatpush1.msra.mxu0 %v188
    %432 = vmatprep.subr.mxu0 0.0
    %433 = vmatpush1.msra.mxu0 %v189
    %434 = vmatprep.subr.mxu0 0.0
    %435 = vmatpush1.msra.mxu0 0.0
    %436 = vmatprep.subr.mxu0 0.0
    %437 = vmatpush1.msra.mxu0 0.0
    %438 = vmatprep.subr.mxu0 0.0
    %439 = vmatpush1.msra.mxu0 0.0
    %440 = vmatprep.subr.mxu0 0.0
    %441 = vmatpush1.msra.mxu0 0.0
    %442 = vmatprep.subr.mxu0 0.0
    %443 = vmatpush1.msra.mxu0 0.0
    %444 = vmatprep.subr.mxu0 0.0
    %445 = vmatpush1.msra.mxu0 0.0
    %446 = vmatprep.subr.mxu0 0.0
    %447 = vmatpush1.msra.mxu0 0.0
    %448 = vmatprep.subr.mxu0 0.0
    %449 = vmatpush1.msra.mxu0 0.0
    %450 = vmatprep.subr.mxu0 0.0
    %451 = vmatpush1.msra.mxu0 0.0
    %452 = vmatprep.subr.mxu0 0.0
    %453 = vmatpush1.msra.mxu0 0.0
    %454 = vmatprep.subr.mxu0 0.0
    %455 = vmatpush1.msra.mxu0 0.0
    %456 = vmatprep.subr.mxu0 0.0
    %457 = vmatpush1.msra.mxu0 0.0
    %458 = vmatprep.subr.mxu0 0.0
    %459 = vmatpush1.msra.mxu0 0.0
    %460 = vmatprep.subr.mxu0 0.0
    %461 = vmatpush1.msra.mxu0 0.0
    %462 = vmatprep.subr.mxu0 0.0
    %463 = vmatpush1.msra.mxu0 0.0
    %464 = vmatprep.subr.mxu0 0.0
    %465 = vmatpush1.msra.mxu0 0.0
    %466 = vmatprep.subr.mxu0 0.0
    %467 = vmatpush1.msra.mxu0 0.0
    %468 = vmatprep.subr.mxu0 0.0
    %469 = vmatpush1.msra.mxu0 0.0
    %470 = vmatprep.subr.mxu0 0.0
    %471 = vmatpush1.msra.mxu0 0.0
    %472 = vmatprep.subr.mxu0 0.0
    %473 = vmatpush1.msra.mxu0 0.0
    %474 = vmatprep.subr.mxu0 0.0
    %475 = vmatpush1.msra.mxu0 0.0
    %476 = vmatprep.subr.mxu0 0.0
    %477 = vmatpush1.msra.mxu0 0.0
    %478 = vmatprep.subr.mxu0 0.0
    %479 = vmatpush1.msra.mxu0 0.0
    %480 = vmatprep.subr.mxu0 0.0
    %481 = vmatpush1.msra.mxu0 0.0
    %482 = vmatprep.subr.mxu0 0.0
    %483 = vmatpush1.msra.mxu0 0.0
    %484 = vmatprep.subr.mxu0 0.0
    %485 = vmatpush1.msra.mxu0 0.0
    %486 = vmatprep.subr.mxu0 0.0
    %487 = vmatpush1.msra.mxu0 0.0
    %488 = vmatprep.subr.mxu0 0.0
    %489 = vmatpush1.msra.mxu0 0.0
    %490 = vmatprep.mubr.f32.mxu0 0.0
    %491 = vmatmul.mubr.f32.gmra.mrb[0].mxu0 %v424
    %v492 = vpop.f32.mrb[0].mxu0
    %v493 = vadd.f32 0.0, %v492
    %v494 = vpop.f32.mrb[0].mxu0
    %495 = vdwg.mxu0
    %v496 = vadd.f32 %v420, %v493
    %v497 = vxor.u32 %v496, 2147483648
    %v498 = vmul.f32 %v497, 1.442695
    %v499 = vpow.pop %v498
    %v500 = vadd.f32 %v499, 1.0
    %v501 = vrcp.pop %v500
    %v502 = vmul.f32 1.0, %v501
    %v503 = vmul.f32 %v502, %v195
    %v504 = vadd.f32 %v503, %v196
    %v505 = vmul.f32 %v504, %v418
    %507 = vrot.lane.b32.xlu0 %v504, 64
    %v508 = vpop.permute.xlu0 %507
    %v510 = vmul.f32 %v504, %v508
    %512 = vrot.lane.b32.xlu0 %v510, 32
    %v513 = vpop.permute.xlu0 %512
    %v515 = vadd.f32 %v505, %v513
    %v516 = vtanh.pop %v515
    %518 = vrot.lane.b32.xlu0 %v516, 64
    %v519 = vpop.permute.xlu0 %518
    %v521 = vmul.f32 %v504, %v519
    %s522 = scalar_lea.vmem %s1, 16
    %v523 = vld [vmem:[%s522] sm:$0xff]
    %vm524 = vcmp.ne.f32.partialorder %v523, 0.0
    %v525 = vsel %vm524, 1, 0
    %526 = vset.pattern.permute.xlu0 0
    %527 = vperm.xlu0 %526, %v525
    %v528 = vpop.permute.xlu0 %527
    %vm529 = vcmp.eq.s32.totalorder %v528, 1
    %v530 = vsel %vm529, %v521, %v417
    %v531 = vsel %vm529, %v515, %v418
    %s532 = scalar_lea.vmem [#allocation2], 24
    %v533 = vld [vmem:[%s532] sm:$0xff]
    %535 = vrot.lane.b32.xlu0 %v530, 32
    %v536 = vpop.permute.xlu0 %535
    %v537 = vsel %vm33, %v536, 0
    %539 = vmatprep.subr.mxu0 0.0
    %540 = vmatpush1.msra.mxu0 %v186
    %541 = vmatprep.subr.mxu0 0.0
    %542 = vmatpush1.msra.mxu0 %v187
    %543 = vmatprep.subr.mxu0 0.0
    %544 = vmatpush1.msra.mxu0 %v188
    %545 = vmatprep.subr.mxu0 0.0
    %546 = vmatpush1.msra.mxu0 %v189
    %547 = vmatprep.subr.mxu0 0.0
    %548 = vmatpush1.msra.mxu0 0.0
    %549 = vmatprep.subr.mxu0 0.0
    %550 = vmatpush1.msra.mxu0 0.0
    %551 = vmatprep.subr.mxu0 0.0
    %552 = vmatpush1.msra.mxu0 0.0
    %553 = vmatprep.subr.mxu0 0.0
    %554 = vmatpush1.msra.mxu0 0.0
    %555 = vmatprep.subr.mxu0 0.0
    %556 = vmatpush1.msra.mxu0 0.0
    %557 = vmatprep.subr.mxu0 0.0
    %558 = vmatpush1.msra.mxu0 0.0
    %559 = vmatprep.subr.mxu0 0.0
    %560 = vmatpush1.msra.mxu0 0.0
    %561 = vmatprep.subr.mxu0 0.0
    %562 = vmatpush1.msra.mxu0 0.0
    %563 = vmatprep.subr.mxu0 0.0
    %564 = vmatpush1.msra.mxu0 0.0
    %565 = vmatprep.subr.mxu0 0.0
    %566 = vmatpush1.msra.mxu0 0.0
    %567 = vmatprep.subr.mxu0 0.0
    %568 = vmatpush1.msra.mxu0 0.0
    %569 = vmatprep.subr.mxu0 0.0
    %570 = vmatpush1.msra.mxu0 0.0
    %571 = vmatprep.subr.mxu0 0.0
    %572 = vmatpush1.msra.mxu0 0.0
    %573 = vmatprep.subr.mxu0 0.0
    %574 = vmatpush1.msra.mxu0 0.0
    %575 = vmatprep.subr.mxu0 0.0
    %576 = vmatpush1.msra.mxu0 0.0
    %577 = vmatprep.subr.mxu0 0.0
    %578 = vmatpush1.msra.mxu0 0.0
    %579 = vmatprep.subr.mxu0 0.0
    %580 = vmatpush1.msra.mxu0 0.0
    %581 = vmatprep.subr.mxu0 0.0
    %582 = vmatpush1.msra.mxu0 0.0
    %583 = vmatprep.subr.mxu0 0.0
    %584 = vmatpush1.msra.mxu0 0.0
    %585 = vmatprep.subr.mxu0 0.0
    %586 = vmatpush1.msra.mxu0 0.0
    %587 = vmatprep.subr.mxu0 0.0
    %588 = vmatpush1.msra.mxu0 0.0
    %589 = vmatprep.subr.mxu0 0.0
    %590 = vmatpush1.msra.mxu0 0.0
    %591 = vmatprep.subr.mxu0 0.0
    %592 = vmatpush1.msra.mxu0 0.0
    %593 = vmatprep.subr.mxu0 0.0
    %594 = vmatpush1.msra.mxu0 0.0
    %595 = vmatprep.subr.mxu0 0.0
    %596 = vmatpush1.msra.mxu0 0.0
    %597 = vmatprep.subr.mxu0 0.0
    %598 = vmatpush1.msra.mxu0 0.0
    %599 = vmatprep.subr.mxu0 0.0
    %600 = vmatpush1.msra.mxu0 0.0
    %601 = vmatprep.subr.mxu0 0.0
    %602 = vmatpush1.msra.mxu0 0.0
    %603 = vmatprep.mubr.f32.mxu0 0.0
    %604 = vmatmul.mubr.f32.gmra.mrb[0].mxu0 %v537
    %v605 = vpop.f32.mrb[0].mxu0
    %v606 = vadd.f32 0.0, %v605
    %v607 = vpop.f32.mrb[0].mxu0
    %608 = vdwg.mxu0
    %v609 = vadd.f32 %v533, %v606
    %v610 = vxor.u32 %v609, 2147483648
    %v611 = vmul.f32 %v610, 1.442695
    %v612 = vpow.pop %v611
    %v613 = vadd.f32 %v612, 1.0
    %v614 = vrcp.pop %v613
    %v615 = vmul.f32 1.0, %v614
    %v616 = vmul.f32 %v615, %v195
    %v617 = vadd.f32 %v616, %v196
    %v618 = vmul.f32 %v617, %v531
    %620 = vrot.lane.b32.xlu0 %v617, 64
    %v621 = vpop.permute.xlu0 %620
    %v623 = vmul.f32 %v617, %v621
    %625 = vrot.lane.b32.xlu0 %v623, 32
    %v626 = vpop.permute.xlu0 %625
    %v628 = vadd.f32 %v618, %v626
    %v629 = vtanh.pop %v628
    %631 = vrot.lane.b32.xlu0 %v629, 64
    %v632 = vpop.permute.xlu0 %631
    %v634 = vmul.f32 %v617, %v632
    %s635 = scalar_lea.vmem %s1, 24
    %v636 = vld [vmem:[%s635] sm:$0xff]
    %vm637 = vcmp.ne.f32.partialorder %v636, 0.0
    %v638 = vsel %vm637, 1, 0
    %639 = vset.pattern.permute.xlu0 0
    %640 = vperm.xlu0 %639, %v638
    %v641 = vpop.permute.xlu0 %640
    %vm642 = vcmp.eq.s32.totalorder %v641, 1
    %v643 = vsel %vm642, %v634, %v530
    %v644 = vsel %vm642, %v628, %v531
    %s645 = scalar_lea.vmem [#allocation2], 32
    %v646 = vld [vmem:[%s645] sm:$0xff]
    %648 = vrot.lane.b32.xlu0 %v643, 32
    %v649 = vpop.permute.xlu0 %648
    %v650 = vsel %vm33, %v649, 0
    %652 = vmatprep.subr.mxu0 0.0
    %653 = vmatpush1.msra.mxu0 %v186
    %654 = vmatprep.subr.mxu0 0.0
    %655 = vmatpush1.msra.mxu0 %v187
    %656 = vmatprep.subr.mxu0 0.0
    %657 = vmatpush1.msra.mxu0 %v188
    %658 = vmatprep.subr.mxu0 0.0
    %659 = vmatpush1.msra.mxu0 %v189
    %660 = vmatprep.subr.mxu0 0.0
    %661 = vmatpush1.msra.mxu0 0.0
    %662 = vmatprep.subr.mxu0 0.0
    %663 = vmatpush1.msra.mxu0 0.0
    %664 = vmatprep.subr.mxu0 0.0
    %665 = vmatpush1.msra.mxu0 0.0
    %666 = vmatprep.subr.mxu0 0.0
    %667 = vmatpush1.msra.mxu0 0.0
    %668 = vmatprep.subr.mxu0 0.0
    %669 = vmatpush1.msra.mxu0 0.0
    %670 = vmatprep.subr.mxu0 0.0
    %671 = vmatpush1.msra.mxu0 0.0
    %672 = vmatprep.subr.mxu0 0.0
    %673 = vmatpush1.msra.mxu0 0.0
    %674 = vmatprep.subr.mxu0 0.0
    %675 = vmatpush1.msra.mxu0 0.0
    %676 = vmatprep.subr.mxu0 0.0
    %677 = vmatpush1.msra.mxu0 0.0
    %678 = vmatprep.subr.mxu0 0.0
    %679 = vmatpush1.msra.mxu0 0.0
    %680 = vmatprep.subr.mxu0 0.0
    %681 = vmatpush1.msra.mxu0 0.0
    %682 = vmatprep.subr.mxu0 0.0
    %683 = vmatpush1.msra.mxu0 0.0
    %684 = vmatprep.subr.mxu0 0.0
    %685 = vmatpush1.msra.mxu0 0.0
    %686 = vmatprep.subr.mxu0 0.0
    %687 = vmatpush1.msra.mxu0 0.0
    %688 = vmatprep.subr.mxu0 0.0
    %689 = vmatpush1.msra.mxu0 0.0
    %690 = vmatprep.subr.mxu0 0.0
    %691 = vmatpush1.msra.mxu0 0.0
    %692 = vmatprep.subr.mxu0 0.0
    %693 = vmatpush1.msra.mxu0 0.0
    %694 = vmatprep.subr.mxu0 0.0
    %695 = vmatpush1.msra.mxu0 0.0
    %696 = vmatprep.subr.mxu0 0.0
    %697 = vmatpush1.msra.mxu0 0.0
    %698 = vmatprep.subr.mxu0 0.0
    %699 = vmatpush1.msra.mxu0 0.0
    %700 = vmatprep.subr.mxu0 0.0
    %701 = vmatpush1.msra.mxu0 0.0
    %702 = vmatprep.subr.mxu0 0.0
    %703 = vmatpush1.msra.mxu0 0.0
    %704 = vmatprep.subr.mxu0 0.0
    %705 = vmatpush1.msra.mxu0 0.0
    %706 = vmatprep.subr.mxu0 0.0
    %707 = vmatpush1.msra.mxu0 0.0
    %708 = vmatprep.subr.mxu0 0.0
    %709 = vmatpush1.msra.mxu0 0.0
    %710 = vmatprep.subr.mxu0 0.0
    %711 = vmatpush1.msra.mxu0 0.0
    %712 = vmatprep.subr.mxu0 0.0
    %713 = vmatpush1.msra.mxu0 0.0
    %714 = vmatprep.subr.mxu0 0.0
    %715 = vmatpush1.msra.mxu0 0.0
    %716 = vmatprep.mubr.f32.mxu0 0.0
    %717 = vmatmul.mubr.f32.gmra.mrb[0].mxu0 %v650
    %v718 = vpop.f32.mrb[0].mxu0
    %v719 = vadd.f32 0.0, %v718
    %v720 = vpop.f32.mrb[0].mxu0
    %721 = vdwg.mxu0
    %v722 = vadd.f32 %v646, %v719
    %v723 = vxor.u32 %v722, 2147483648
    %v724 = vmul.f32 %v723, 1.442695
    %v725 = vpow.pop %v724
    %v726 = vadd.f32 %v725, 1.0
    %v727 = vrcp.pop %v726
    %v728 = vmul.f32 1.0, %v727
    %v729 = vmul.f32 %v728, %v195
    %v730 = vadd.f32 %v729, %v196
    %v731 = vmul.f32 %v730, %v644
    %733 = vrot.lane.b32.xlu0 %v730, 64
    %v734 = vpop.permute.xlu0 %733
    %v736 = vmul.f32 %v730, %v734
    %738 = vrot.lane.b32.xlu0 %v736, 32
    %v739 = vpop.permute.xlu0 %738
    %v741 = vadd.f32 %v731, %v739
    %v742 = vtanh.pop %v741
    %744 = vrot.lane.b32.xlu0 %v742, 64
    %v745 = vpop.permute.xlu0 %744
    %v747 = vmul.f32 %v730, %v745
    %s748 = scalar_lea.vmem %s1, 32
    %v749 = vld [vmem:[%s748] sm:$0xff]
    %vm750 = vcmp.ne.f32.partialorder %v749, 0.0
    %v751 = vsel %vm750, 1, 0
    %752 = vset.pattern.permute.xlu0 0
    %753 = vperm.xlu0 %752, %v751
    %v754 = vpop.permute.xlu0 %753
    %vm755 = vcmp.eq.s32.totalorder %v754, 1
    %v756 = vsel %vm755, %v747, %v643
    %v757 = vsel %vm755, %v741, %v644
    %s758 = scalar_lea.vmem [#allocation2], 40
    %v759 = vld [vmem:[%s758] sm:$0xff]
    %761 = vrot.lane.b32.xlu0 %v756, 32
    %v762 = vpop.permute.xlu0 %761
    %v763 = vsel %vm33, %v762, 0
    %765 = vmatprep.subr.mxu0 0.0
    %766 = vmatpush1.msra.mxu0 %v186
    %767 = vmatprep.subr.mxu0 0.0
    %768 = vmatpush1.msra.mxu0 %v187
    %769 = vmatprep.subr.mxu0 0.0
    %770 = vmatpush1.msra.mxu0 %v188
    %771 = vmatprep.subr.mxu0 0.0
    %772 = vmatpush1.msra.mxu0 %v189
    %773 = vmatprep.subr.mxu0 0.0
    %774 = vmatpush1.msra.mxu0 0.0
    %775 = vmatprep.subr.mxu0 0.0
    %776 = vmatpush1.msra.mxu0 0.0
    %777 = vmatprep.subr.mxu0 0.0
    %778 = vmatpush1.msra.mxu0 0.0
    %779 = vmatprep.subr.mxu0 0.0
    %780 = vmatpush1.msra.mxu0 0.0
    %781 = vmatprep.subr.mxu0 0.0
    %782 = vmatpush1.msra.mxu0 0.0
    %783 = vmatprep.subr.mxu0 0.0
    %784 = vmatpush1.msra.mxu0 0.0
    %785 = vmatprep.subr.mxu0 0.0
    %786 = vmatpush1.msra.mxu0 0.0
    %787 = vmatprep.subr.mxu0 0.0
    %788 = vmatpush1.msra.mxu0 0.0
    %789 = vmatprep.subr.mxu0 0.0
    %790 = vmatpush1.msra.mxu0 0.0
    %791 = vmatprep.subr.mxu0 0.0
    %792 = vmatpush1.msra.mxu0 0.0
    %793 = vmatprep.subr.mxu0 0.0
    %794 = vmatpush1.msra.mxu0 0.0
    %795 = vmatprep.subr.mxu0 0.0
    %796 = vmatpush1.msra.mxu0 0.0
    %797 = vmatprep.subr.mxu0 0.0
    %798 = vmatpush1.msra.mxu0 0.0
    %799 = vmatprep.subr.mxu0 0.0
    %800 = vmatpush1.msra.mxu0 0.0
    %801 = vmatprep.subr.mxu0 0.0
    %802 = vmatpush1.msra.mxu0 0.0
    %803 = vmatprep.subr.mxu0 0.0
    %804 = vmatpush1.msra.mxu0 0.0
    %805 = vmatprep.subr.mxu0 0.0
    %806 = vmatpush1.msra.mxu0 0.0
    %807 = vmatprep.subr.mxu0 0.0
    %808 = vmatpush1.msra.mxu0 0.0
    %809 = vmatprep.subr.mxu0 0.0
    %810 = vmatpush1.msra.mxu0 0.0
    %811 = vmatprep.subr.mxu0 0.0
    %812 = vmatpush1.msra.mxu0 0.0
    %813 = vmatprep.subr.mxu0 0.0
    %814 = vmatpush1.msra.mxu0 0.0
    %815 = vmatprep.subr.mxu0 0.0
    %816 = vmatpush1.msra.mxu0 0.0
    %817 = vmatprep.subr.mxu0 0.0
    %818 = vmatpush1.msra.mxu0 0.0
    %819 = vmatprep.subr.mxu0 0.0
    %820 = vmatpush1.msra.mxu0 0.0
    %821 = vmatprep.subr.mxu0 0.0
    %822 = vmatpush1.msra.mxu0 0.0
    %823 = vmatprep.subr.mxu0 0.0
    %824 = vmatpush1.msra.mxu0 0.0
    %825 = vmatprep.subr.mxu0 0.0
    %826 = vmatpush1.msra.mxu0 0.0
    %827 = vmatprep.subr.mxu0 0.0
    %828 = vmatpush1.msra.mxu0 0.0
    %829 = vmatprep.mubr.f32.mxu0 0.0
    %830 = vmatmul.mubr.f32.gmra.mrb[0].mxu0 %v763
    %v831 = vpop.f32.mrb[0].mxu0
    %v832 = vadd.f32 0.0, %v831
    %v833 = vpop.f32.mrb[0].mxu0
    %834 = vdwg.mxu0
    %v835 = vadd.f32 %v759, %v832
    %v836 = vxor.u32 %v835, 2147483648
    %v837 = vmul.f32 %v836, 1.442695
    %v838 = vpow.pop %v837
    %v839 = vadd.f32 %v838, 1.0
    %v840 = vrcp.pop %v839
    %v841 = vmul.f32 1.0, %v840
    %v842 = vmul.f32 %v841, %v195
    %v843 = vadd.f32 %v842, %v196
    %v844 = vmul.f32 %v843, %v757
    %846 = vrot.lane.b32.xlu0 %v843, 64
    %v847 = vpop.permute.xlu0 %846
    %v849 = vmul.f32 %v843, %v847
    %851 = vrot.lane.b32.xlu0 %v849, 32
    %v852 = vpop.permute.xlu0 %851
    %v854 = vadd.f32 %v844, %v852
    %v855 = vtanh.pop %v854
    %857 = vrot.lane.b32.xlu0 %v855, 64
    %v858 = vpop.permute.xlu0 %857
    %v860 = vmul.f32 %v843, %v858
    %s861 = scalar_lea.vmem %s1, 40
    %v862 = vld [vmem:[%s861] sm:$0xff]
    %vm863 = vcmp.ne.f32.partialorder %v862, 0.0
    %v864 = vsel %vm863, 1, 0
    %865 = vset.pattern.permute.xlu0 0
    %866 = vperm.xlu0 %865, %v864
    %v867 = vpop.permute.xlu0 %866
    %vm868 = vcmp.eq.s32.totalorder %v867, 1
    %v869 = vsel %vm868, %v860, %v756
    %v870 = vsel %vm868, %v854, %v757
    %s871 = scalar_lea.vmem [#allocation2], 48
    %v872 = vld [vmem:[%s871] sm:$0xff]
    %874 = vrot.lane.b32.xlu0 %v869, 32
    %v875 = vpop.permute.xlu0 %874
    %v876 = vsel %vm33, %v875, 0
    %878 = vmatprep.subr.mxu0 0.0
    %879 = vmatpush1.msra.mxu0 %v186
    %880 = vmatprep.subr.mxu0 0.0
    %881 = vmatpush1.msra.mxu0 %v187
    %882 = vmatprep.subr.mxu0 0.0
    %883 = vmatpush1.msra.mxu0 %v188
    %884 = vmatprep.subr.mxu0 0.0
    %885 = vmatpush1.msra.mxu0 %v189
    %886 = vmatprep.subr.mxu0 0.0
    %887 = vmatpush1.msra.mxu0 0.0
    %888 = vmatprep.subr.mxu0 0.0
    %889 = vmatpush1.msra.mxu0 0.0
    %890 = vmatprep.subr.mxu0 0.0
    %891 = vmatpush1.msra.mxu0 0.0
    %892 = vmatprep.subr.mxu0 0.0
    %893 = vmatpush1.msra.mxu0 0.0
    %894 = vmatprep.subr.mxu0 0.0
    %895 = vmatpush1.msra.mxu0 0.0
    %896 = vmatprep.subr.mxu0 0.0
    %897 = vmatpush1.msra.mxu0 0.0
    %898 = vmatprep.subr.mxu0 0.0
    %899 = vmatpush1.msra.mxu0 0.0
    %900 = vmatprep.subr.mxu0 0.0
    %901 = vmatpush1.msra.mxu0 0.0
    %902 = vmatprep.subr.mxu0 0.0
    %903 = vmatpush1.msra.mxu0 0.0
    %904 = vmatprep.subr.mxu0 0.0
    %905 = vmatpush1.msra.mxu0 0.0
    %906 = vmatprep.subr.mxu0 0.0
    %907 = vmatpush1.msra.mxu0 0.0
    %908 = vmatprep.subr.mxu0 0.0
    %909 = vmatpush1.msra.mxu0 0.0
    %910 = vmatprep.subr.mxu0 0.0
    %911 = vmatpush1.msra.mxu0 0.0
    %912 = vmatprep.subr.mxu0 0.0
    %913 = vmatpush1.msra.mxu0 0.0
    %914 = vmatprep.subr.mxu0 0.0
    %915 = vmatpush1.msra.mxu0 0.0
    %916 = vmatprep.subr.mxu0 0.0
    %917 = vmatpush1.msra.mxu0 0.0
    %918 = vmatprep.subr.mxu0 0.0
    %919 = vmatpush1.msra.mxu0 0.0
    %920 = vmatprep.subr.mxu0 0.0
    %921 = vmatpush1.msra.mxu0 0.0
    %922 = vmatprep.subr.mxu0 0.0
    %923 = vmatpush1.msra.mxu0 0.0
    %924 = vmatprep.subr.mxu0 0.0
    %925 = vmatpush1.msra.mxu0 0.0
    %926 = vmatprep.subr.mxu0 0.0
    %927 = vmatpush1.msra.mxu0 0.0
    %928 = vmatprep.subr.mxu0 0.0
    %929 = vmatpush1.msra.mxu0 0.0
    %930 = vmatprep.subr.mxu0 0.0
    %931 = vmatpush1.msra.mxu0 0.0
    %932 = vmatprep.subr.mxu0 0.0
    %933 = vmatpush1.msra.mxu0 0.0
    %934 = vmatprep.subr.mxu0 0.0
    %935 = vmatpush1.msra.mxu0 0.0
    %936 = vmatprep.subr.mxu0 0.0
    %937 = vmatpush1.msra.mxu0 0.0
    %938 = vmatprep.subr.mxu0 0.0
    %939 = vmatpush1.msra.mxu0 0.0
    %940 = vmatprep.subr.mxu0 0.0
    %941 = vmatpush1.msra.mxu0 0.0
    %942 = vmatprep.mubr.f32.mxu0 0.0
    %943 = vmatmul.mubr.f32.gmra.mrb[0].mxu0 %v876
    %v944 = vpop.f32.mrb[0].mxu0
    %v945 = vadd.f32 0.0, %v944
    %v946 = vpop.f32.mrb[0].mxu0
    %947 = vdwg.mxu0
    %v948 = vadd.f32 %v872, %v945
    %v949 = vxor.u32 %v948, 2147483648
    %v950 = vmul.f32 %v949, 1.442695
    %v951 = vpow.pop %v950
    %v952 = vadd.f32 %v951, 1.0
    %v953 = vrcp.pop %v952
    %v954 = vmul.f32 1.0, %v953
    %v955 = vmul.f32 %v954, %v195
    %v956 = vadd.f32 %v955, %v196
    %v957 = vmul.f32 %v956, %v870
    %959 = vrot.lane.b32.xlu0 %v956, 64
    %v960 = vpop.permute.xlu0 %959
    %v962 = vmul.f32 %v956, %v960
    %964 = vrot.lane.b32.xlu0 %v962, 32
    %v965 = vpop.permute.xlu0 %964
    %v967 = vadd.f32 %v957, %v965
    %v968 = vtanh.pop %v967
    %970 = vrot.lane.b32.xlu0 %v968, 64
    %v971 = vpop.permute.xlu0 %970
    %v973 = vmul.f32 %v956, %v971
    %s974 = scalar_lea.vmem %s1, 48
    %v975 = vld [vmem:[%s974] sm:$0xff]
    %vm976 = vcmp.ne.f32.partialorder %v975, 0.0
    %v977 = vsel %vm976, 1, 0
    %978 = vset.pattern.permute.xlu0 0
    %979 = vperm.xlu0 %978, %v977
    %v980 = vpop.permute.xlu0 %979
    %vm981 = vcmp.eq.s32.totalorder %v980, 1
    %v982 = vsel %vm981, %v973, %v869
    %v983 = vsel %vm981, %v967, %v870
    %s984 = scalar_lea.vmem [#allocation2], 56
    %v985 = vld [vmem:[%s984] sm:$0xff]
    %987 = vrot.lane.b32.xlu0 %v982, 32
    %v988 = vpop.permute.xlu0 %987
    %v989 = vsel %vm33, %v988, 0
    %991 = vmatprep.subr.mxu0 0.0
    %992 = vmatpush1.msra.mxu0 %v186
    %993 = vmatprep.subr.mxu0 0.0
    %994 = vmatpush1.msra.mxu0 %v187
    %995 = vmatprep.subr.mxu0 0.0
    %996 = vmatpush1.msra.mxu0 %v188
    %997 = vmatprep.subr.mxu0 0.0
    %998 = vmatpush1.msra.mxu0 %v189
    %999 = vmatprep.subr.mxu0 0.0
    %1000 = vmatpush1.msra.mxu0 0.0
    %1001 = vmatprep.subr.mxu0 0.0
    %1002 = vmatpush1.msra.mxu0 0.0
    %1003 = vmatprep.subr.mxu0 0.0
    %1004 = vmatpush1.msra.mxu0 0.0
    %1005 = vmatprep.subr.mxu0 0.0
    %1006 = vmatpush1.msra.mxu0 0.0
    %1007 = vmatprep.subr.mxu0 0.0
    %1008 = vmatpush1.msra.mxu0 0.0
    %1009 = vmatprep.subr.mxu0 0.0
    %1010 = vmatpush1.msra.mxu0 0.0
    %1011 = vmatprep.subr.mxu0 0.0
    %1012 = vmatpush1.msra.mxu0 0.0
    %1013 = vmatprep.subr.mxu0 0.0
    %1014 = vmatpush1.msra.mxu0 0.0
    %1015 = vmatprep.subr.mxu0 0.0
    %1016 = vmatpush1.msra.mxu0 0.0
    %1017 = vmatprep.subr.mxu0 0.0
    %1018 = vmatpush1.msra.mxu0 0.0
    %1019 = vmatprep.subr.mxu0 0.0
    %1020 = vmatpush1.msra.mxu0 0.0
    %1021 = vmatprep.subr.mxu0 0.0
    %1022 = vmatpush1.msra.mxu0 0.0
    %1023 = vmatprep.subr.mxu0 0.0
    %1024 = vmatpush1.msra.mxu0 0.0
    %1025 = vmatprep.subr.mxu0 0.0
    %1026 = vmatpush1.msra.mxu0 0.0
    %1027 = vmatprep.subr.mxu0 0.0
    %1028 = vmatpush1.msra.mxu0 0.0
    %1029 = vmatprep.subr.mxu0 0.0
    %1030 = vmatpush1.msra.mxu0 0.0
    %1031 = vmatprep.subr.mxu0 0.0
    %1032 = vmatpush1.msra.mxu0 0.0
    %1033 = vmatprep.subr.mxu0 0.0
    %1034 = vmatpush1.msra.mxu0 0.0
    %1035 = vmatprep.subr.mxu0 0.0
    %1036 = vmatpush1.msra.mxu0 0.0
    %1037 = vmatprep.subr.mxu0 0.0
    %1038 = vmatpush1.msra.mxu0 0.0
    %1039 = vmatprep.subr.mxu0 0.0
    %1040 = vmatpush1.msra.mxu0 0.0
    %1041 = vmatprep.subr.mxu0 0.0
    %1042 = vmatpush1.msra.mxu0 0.0
    %1043 = vmatprep.subr.mxu0 0.0
    %1044 = vmatpush1.msra.mxu0 0.0
    %1045 = vmatprep.subr.mxu0 0.0
    %1046 = vmatpush1.msra.mxu0 0.0
    %1047 = vmatprep.subr.mxu0 0.0
    %1048 = vmatpush1.msra.mxu0 0.0
    %1049 = vmatprep.subr.mxu0 0.0
    %1050 = vmatpush1.msra.mxu0 0.0
    %1051 = vmatprep.subr.mxu0 0.0
    %1052 = vmatpush1.msra.mxu0 0.0
    %1053 = vmatprep.subr.mxu0 0.0
    %1054 = vmatpush1.msra.mxu0 0.0
    %1055 = vmatprep.mubr.f32.mxu0 0.0
    %1056 = vmatmul.mubr.f32.gmra.mrb[0].mxu0 %v989
    %v1057 = vpop.f32.mrb[0].mxu0
    %v1058 = vadd.f32 0.0, %v1057
    %v1059 = vpop.f32.mrb[0].mxu0
    %1060 = vdwg.mxu0
    %v1061 = vadd.f32 %v985, %v1058
    %v1062 = vxor.u32 %v1061, 2147483648
    %v1063 = vmul.f32 %v1062, 1.442695
    %v1064 = vpow.pop %v1063
    %v1065 = vadd.f32 %v1064, 1.0
    %v1066 = vrcp.pop %v1065
    %v1067 = vmul.f32 1.0, %v1066
    %v1068 = vmul.f32 %v1067, %v195
    %v1069 = vadd.f32 %v1068, %v196
    %v1070 = vmul.f32 %v1069, %v983
    %1072 = vrot.lane.b32.xlu0 %v1069, 64
    %v1073 = vpop.permute.xlu0 %1072
    %v1075 = vmul.f32 %v1069, %v1073
    %1077 = vrot.lane.b32.xlu0 %v1075, 32
    %v1078 = vpop.permute.xlu0 %1077
    %v1080 = vadd.f32 %v1070, %v1078
    %v1081 = vtanh.pop %v1080
    %1083 = vrot.lane.b32.xlu0 %v1081, 64
    %v1084 = vpop.permute.xlu0 %1083
    %v1086 = vmul.f32 %v1069, %v1084
    %s1087 = scalar_lea.vmem %s1, 56
    %v1088 = vld [vmem:[%s1087] sm:$0xff]
    %vm1089 = vcmp.ne.f32.partialorder %v1088, 0.0
    %v1090 = vsel %vm1089, 1, 0
    %1091 = vset.pattern.permute.xlu0 0
    %1092 = vperm.xlu0 %1091, %v1090
    %v1093 = vpop.permute.xlu0 %1092
    %vm1094 = vcmp.eq.s32.totalorder %v1093, 1
    %v1095 = vsel %vm1094, %v1086, %v982
    %1097 = vrot.lane.b32.xlu0 %v1095, 32
    %v1098 = vpop.permute.xlu0 %1097
    %1100 = vst.msk [vmem:[#allocation3] sm:$0xff] %vm33, %v1098
    // Predicated region
    $region22: #{tpu_custom_call.1} parent=1 // pred_check
      _
    $region23: #{tpu_custom_call.1} parent=1 // pred_check_branch
      %1102 = sbr.rel (0) target = $region25
    $region24: #{tpu_custom_call.1} parent=1 // pred_region
      %s1104 = ssub.s32 128, 128
      %1105 = vsyncadd [#allocation4], %s1104
      %s1107 = sshll.u32 [#allocation3], 4
      %s1108 = int_to_ptr.vmem [resolvable:$true] %s1107
      %1110 = dma.vmem_to_hbm [thread:$0]  %s1108, 128, %s5, [#allocation4]
    $region25: #{tpu_custom_call.1} parent=1 // pred_fallthru
      _
    // Predicated region
    $region26: #{tpu_custom_call.1} parent=1 // pred_check
      _
    $region27: #{tpu_custom_call.1} parent=1 // pred_check_branch
      %1112 = sbr.rel (0) target = $region29
    $region28: #{tpu_custom_call.1} parent=1 // pred_region
      %1113 = dma.done [#allocation4], 128
    $region29: #{tpu_custom_call.1} parent=1 // pred_fallthru
      _
    %1114 = vsyncpa [#allocation4], 1

</llo_original>
